<compile_context>
chip_gen: v7x
topology: tpu7x:2x2x1
jax: 0.10.0
libtpu: 0.0.40
codegen_flags: <defaults>
</compile_context>

<pallas_src>
import functools

import jax
import jax.numpy as jnp
from jax.experimental import pallas as pl
from jax.experimental.pallas import tpu as pltpu

_LN_EPS = 1e-5


def _round_up(x, m):
    return (x + m - 1) // m * m


# ----------------------------- fused Pallas kernel ---------------------------

def _rev_gnn_fused_kernel(x_ref, w1_ref, b1_ref, adj_ref, vecs_ref, w_ref,
                          fin_ref, w2_ref, b2_ref, out_ref, h_scr, y_scr,
                          *, num_groups, gc, hid_c):
    l = pl.program_id(0)          # layer index
    i = pl.program_id(1)          # group index within the layer
    num_layers = pl.num_programs(0)
    G = num_groups
    n, gcpad = y_scr.shape

    lane = jax.lax.broadcasted_iota(jnp.int32, (1, gcpad), 1)
    mask = (lane < gc).astype(jnp.float32)        # real-channel lane mask

    # ---- very first step: fused lin1, x @ [W1_g0 | ... | W1_g{G-1}] + b1 ----
    @pl.when((l == 0) & (i == 0))
    def _():
        h_all = (jnp.dot(x_ref[...], w1_ref[...],
                         preferred_element_type=jnp.float32) + b1_ref[...])
        for g in range(G):
            h_scr[g] = h_all[:, g * gcpad:(g + 1) * gcpad]

    # ---- start of each layer: GroupAddRev carry y_in = sum(xs[1:]) ---------
    @pl.when(i == 0)
    def _():
        acc = jnp.zeros((n, gcpad), jnp.float32)
        for g in range(1, G):
            acc = acc + h_scr[g]
        y_scr[...] = acc

    # ---- GNNBlock: relu(LayerNorm(y)) -> SAGEConv (mean aggregation) -------
    vecs = vecs_ref[0]                            # (8, GC_PAD) f32
    gamma, beta, bl = vecs[0:1, :], vecs[1:2, :], vecs[2:3, :]

    y = y_scr[...]
    # padded lanes of y are zero by construction -> mean needs no mask
    mu = jnp.sum(y, axis=-1, keepdims=True) * (1.0 / gc)
    d = (y - mu) * mask
    var = jnp.sum(d * d, axis=-1, keepdims=True) * (1.0 / gc)
    hnorm = jnp.maximum(d * jax.lax.rsqrt(var + _LN_EPS) * gamma + beta, 0.0)

    h_b = hnorm.astype(jnp.bfloat16)              # bf16 MXU operands, f32 acc
    agg = jnp.dot(adj_ref[...], h_b, preferred_element_type=jnp.float32)
    # Fused SAGE matmul: [agg | h] @ [lin_l W^T ; lin_r W^T]  (single K=2*GC_PAD)
    lhs = jnp.concatenate([agg.astype(jnp.bfloat16), h_b], axis=-1)
    conv = jnp.dot(lhs, w_ref[0], preferred_element_type=jnp.float32) + bl

    # ---- reversible residual: y_new = xs[i] + conv (dynamic index update) ---
    y_new = h_scr[i] + conv
    h_scr[i] = y_new
    y_scr[...] = y_new

    # ---- last step: relu(LayerNorm(h)) @ W2 + b2 (dropout identity in eval) -
    @pl.when((l == num_layers - 1) & (i == G - 1))
    def _():
        fin = fin_ref[...]                        # (G, 2, GC_PAD) f32
        tot = jnp.zeros((n, 1), jnp.float32)
        for g in range(G):
            tot = tot + jnp.sum(h_scr[g], axis=-1, keepdims=True)
        mu_f = tot * (1.0 / hid_c)
        vtot = jnp.zeros((n, 1), jnp.float32)
        for g in range(G):
            dg = (h_scr[g] - mu_f) * mask
            vtot = vtot + jnp.sum(dg * dg, axis=-1, keepdims=True)
        inv = jax.lax.rsqrt(vtot * (1.0 / hid_c) + _LN_EPS)

        # Recompute dg per group (cheap VPU work) instead of holding G live
        # f32 tiles, then do one wide K-stacked projection.
        hgs = []
        for g in range(G):
            dg = (h_scr[g] - mu_f) * mask
            hgs.append(jnp.maximum(dg * inv * fin[g, 0:1, :] + fin[g, 1:2, :],
                                   0.0).astype(jnp.bfloat16))
        h_cat = jnp.concatenate(hgs, axis=-1)     # (N, G*GC_PAD) bf16
        out_ref[...] = (jnp.dot(h_cat, w2_ref[...],
                                preferred_element_type=jnp.float32)
                        + b2_ref[...])


# --------------------------------- wrapper -----------------------------------

def rev_gnn_forward(x, adj, params, num_groups):
    """RevGNN.forward in eval mode, fully fused into one Pallas kernel."""
    N, IN_C = x.shape
    HID_C = params["lin1_w_t"].shape[1]
    OUT_C = params["lin2_w_t"].shape[1]
    G = num_groups
    L = len(params["layers"])
    GC = HID_C // G
    NB = L * G

    GC_PAD = _round_up(GC, 128)
    IN_PAD = _round_up(IN_C, 128)
    OUT_PAD = _round_up(OUT_C, 128)
    WIDE = G * GC_PAD
    # bf16 operands prefer N % 16 == 0; non-multiples only cost layout padding.
    assert N % 8 == 0, "node count must be a multiple of 8 (sublane tiling)"

    bf16, f32 = jnp.bfloat16, jnp.float32

    # ---- one-time param packing / lane padding (glue, not hot path) --------
    x_pad = jnp.zeros((N, IN_PAD), f32).at[:, :IN_C].set(x).astype(bf16)
    adj_b = adj.astype(bf16)

    # lin1 fused into ONE wide matmul: group g's real channels live in lanes
    # [g*GC_PAD, g*GC_PAD + GC) so the result can be sliced straight into h_scr.
    w1 = params["lin1_w_t"]
    w1_pad = jnp.zeros((IN_PAD, WIDE), f32)
    b1_pad = jnp.zeros((1, WIDE), f32)
    for g in range(G):
        w1_pad = w1_pad.at[:IN_C, g * GC_PAD:g * GC_PAD + GC].set(
            w1[:, g * GC:(g + 1) * GC])
        b1_pad = b1_pad.at[0, g * GC_PAD:g * GC_PAD + GC].set(
            params["lin1_b"][g * GC:(g + 1) * GC])
    w1_pad = w1_pad.astype(bf16)

    # Per-block LN/bias vectors and K-stacked SAGE weights [lin_l W^T ; lin_r W^T].
    blk_vecs = jnp.zeros((NB, 8, GC_PAD), f32)       # rows: gamma, beta, lin_l bias
    blk_w = jnp.zeros((NB, 2 * GC_PAD, GC_PAD), f32)
    for l in range(L):
        for g in range(G):
            gam, bet, wl_t, blb, wr_t = params["layers"][l][g]
            t = l * G + g
            blk_vecs = (blk_vecs.at[t, 0, :GC].set(gam)
                                .at[t, 1, :GC].set(bet)
                                .at[t, 2, :GC].set(blb))
            blk_w = (blk_w.at[t, :GC, :GC].set(wl_t)
                          .at[t, GC_PAD:GC_PAD + GC, :GC].set(wr_t))
    blk_w = blk_w.astype(bf16)

    # Final LN params + W2 K-stacked to match the lane-concatenated activations.
    fin_norm = jnp.zeros((G, 2, GC_PAD), f32)
    w2_pad = jnp.zeros((WIDE, OUT_PAD), f32)
    for g in range(G):
        fin_norm = (fin_norm.at[g, 0, :GC].set(params["norm_g"][g * GC:(g + 1) * GC])
                            .at[g, 1, :GC].set(params["norm_b"][g * GC:(g + 1) * GC]))
        w2_pad = w2_pad.at[g * GC_PAD:g * GC_PAD + GC, :OUT_C].set(
            params["lin2_w_t"][g * GC:(g + 1) * GC, :])
    w2_pad = w2_pad.astype(bf16)
    b2_pad = jnp.zeros((1, OUT_PAD), f32).at[0, :OUT_C].set(params["lin2_b"])

    inputs = (x_pad, w1_pad, b1_pad, adj_b, blk_vecs, blk_w, fin_norm, w2_pad,
              b2_pad)

    flops = (2 * N * IN_C * HID_C
             + L * G * (2 * N * N * GC + 2 * N * (2 * GC) * GC)
             + 2 * N * HID_C * OUT_C)
    bytes_accessed = (sum(int(a.size) * a.dtype.itemsize for a in inputs)
                      + N * OUT_PAD * 4)
    cost = pl.CostEstimate(flops=flops, transcendentals=N * (NB + 1),
                           bytes_accessed=bytes_accessed)

    kernel = functools.partial(_rev_gnn_fused_kernel,
                               num_groups=G, gc=GC, hid_c=HID_C)

    const2 = lambda l, i: (0, 0)
    const3 = lambda l, i: (0, 0, 0)
    # Resident constant-index inputs are DMA'd once -> single-buffer them so the
    # dense adjacency / stacked weights don't occupy 2x VMEM (matters on v7x).
    single = pl.Buffered(1)

    out_pad = pl.pallas_call(
        kernel,
        out_shape=jax.ShapeDtypeStruct((N, OUT_PAD), f32),
        grid_spec=pltpu.PrefetchScalarGridSpec(
            num_scalar_prefetch=0,
            grid=(L, G),
            in_specs=[
                pl.BlockSpec((N, IN_PAD), const2, pipeline_mode=single),      # x
                pl.BlockSpec((IN_PAD, WIDE), const2, pipeline_mode=single),   # W1 (wide)
                pl.BlockSpec((1, WIDE), const2, pipeline_mode=single),        # b1
                pl.BlockSpec((N, N), const2, pipeline_mode=single),           # adj
                pl.BlockSpec((1, 8, GC_PAD),                                  # per-block LN/bias
                             lambda l, i: (l * G + i, 0, 0)),
                pl.BlockSpec((1, 2 * GC_PAD, GC_PAD),                         # per-block fused SAGE W
                             lambda l, i: (l * G + i, 0, 0)),
                pl.BlockSpec((G, 2, GC_PAD), const3, pipeline_mode=single),   # final norm
                pl.BlockSpec((WIDE, OUT_PAD), const2, pipeline_mode=single),  # W2 (K-stacked)
                pl.BlockSpec((1, OUT_PAD), const2, pipeline_mode=single),     # b2
            ],
            out_specs=pl.BlockSpec((N, OUT_PAD), const2),
            scratch_shapes=[
                pltpu.VMEM((G, N, GC_PAD), f32),   # resident hidden state h
                pltpu.VMEM((N, GC_PAD), f32),      # group carry y_in
            ],
        ),
        compiler_params=pltpu.CompilerParams(
            # Both grid axes carry sequential state (reversible group chain).
            dimension_semantics=("arbitrary", "arbitrary"),
            # True footprint is well under 1 MiB at these sizes; keep the limit
            # within v7x's 32 MiB default scoped VMEM.
            vmem_limit_bytes=32 * 1024 * 1024,
        ),
        cost_estimate=cost,
    )(*inputs)

    return out_pad[:, :OUT_C]


# ------------------- pure-JAX reference (matched precision) ------------------

def _ref_forward(x, adj, params, num_groups):
    """Same math as the kernel: f32 LN/bias/residual, bf16 MXU operands."""
    bf = jnp.bfloat16
    adj_b = adj.astype(bf)

    def ln(v, g, b):
        mu = v.mean(-1, keepdims=True)
        var = ((v - mu) ** 2).mean(-1, keepdims=True)
        return (v - mu) * jax.lax.rsqrt(var + _LN_EPS) * g + b

    def block(v, p):
        g, b, wl_t, bl, wr_t = p
        h = jnp.maximum(ln(v, g, b), 0.0).astype(bf)
        agg = jnp.dot(adj_b, h, preferred_element_type=jnp.float32)
        return (jnp.dot(agg.astype(bf), wl_t.astype(bf),
                        preferred_element_type=jnp.float32) + bl
                + jnp.dot(h, wr_t.astype(bf),
                          preferred_element_type=jnp.float32))

    h = (jnp.dot(x.astype(bf), params["lin1_w_t"].astype(bf),
                 preferred_element_type=jnp.float32) + params["lin1_b"])
    for layer in params["layers"]:
        xs = jnp.split(h, num_groups, axis=-1)
        y = functools.reduce(jnp.add, xs[1:])
        ys = []
        for i in range(num_groups):
            y = xs[i] + block(y, layer[i])
            ys.append(y)
        h = jnp.concatenate(ys, axis=-1)
    h = jnp.maximum(ln(h, params["norm_g"], params["norm_b"]), 0.0).astype(bf)
    return (jnp.dot(h, params["lin2_w_t"].astype(bf),
                    preferred_element_type=jnp.float32) + params["lin2_b"])


# ------------------------------ param init -----------------------------------

def init_params(key, in_c, hid_c, out_c, num_layers, num_groups):
    assert hid_c % num_groups == 0
    gc = hid_c // num_groups
    n_keys = 6 + num_layers * num_groups * 5
    keys = iter(jax.random.split(key, n_keys))

    def nrm(shape, scale=0.2):
        return scale * jax.random.normal(next(keys), shape, dtype=jnp.float32)

    params = {
        "lin1_w_t": nrm((in_c, hid_c)),
        "lin1_b": nrm((hid_c,)),
        "norm_g": jnp.ones((hid_c,), jnp.float32) + nrm((hid_c,), 0.05),
        "norm_b": nrm((hid_c,), 0.05),
        "lin2_w_t": nrm((hid_c, out_c)),
        "lin2_b": nrm((out_c,)),
        "layers": [],
    }
    for _ in range(num_layers):
        layer = []
        for _ in range(num_groups):
            layer.append((
                jnp.ones((gc,), jnp.float32) + nrm((gc,), 0.05),  # LN gamma
                nrm((gc,), 0.05),                                  # LN beta
                nrm((gc, gc)),                                     # SAGE lin_l W^T
                nrm((gc,)),                                        # SAGE lin_l bias
                nrm((gc, gc)),                                     # SAGE lin_r W^T
            ))
        params["layers"].append(layer)
    return params


def build_mean_adjacency(edge_index, num_nodes):
    src, dst = edge_index[0], edge_index[1]
    adj = jnp.zeros((num_nodes, num_nodes), jnp.float32).at[dst, src].add(1.0)
    deg = adj.sum(axis=1, keepdims=True)
    return jnp.where(deg > 0, adj / jnp.maximum(deg, 1.0), 0.0)


# ----------------------------------- main -------------------------------------

if __name__ == "__main__":
    N, E = 64, 256
    IN_C, HID_C, OUT_C = 16, 32, 8
    NUM_LAYERS, NUM_GROUPS = 2, 2

    root = jax.random.PRNGKey(0)
    kx, ksrc, kdst, kp = jax.random.split(root, 4)

    x = jax.random.normal(kx, (N, IN_C), dtype=jnp.float32)
    src = jax.random.randint(ksrc, (E,), 0, N)
    dst = jax.random.randint(kdst, (E,), 0, N)
    edge_index = jnp.stack([src, dst], axis=0)          # [2, E]
    adj_mean = build_mean_adjacency(edge_index, N)      # [N, N]

    params = init_params(kp, IN_C, HID_C, OUT_C, NUM_LAYERS, NUM_GROUPS)

    out = rev_gnn_forward(x, adj_mean, params, NUM_GROUPS)
    out = jax.block_until_ready(out)

    ref = _ref_forward(x, adj_mean, params, NUM_GROUPS)
    assert out.shape == (N, OUT_C)
    assert jnp.allclose(out, ref, atol=1e-2, rtol=1e-2), "mismatch vs reference"

    print("KERNEL_OK")
</pallas_src>

<mosaic_0001>
module attributes {stable_mosaic.version = 11 : i64} {
  func.func @_rev_gnn_fused_kernel(%arg0: i32, %arg1: i32, %arg2: memref<64x128xbf16, #tpu.memory_space<vmem>>, %arg3: memref<128x256xbf16, #tpu.memory_space<vmem>>, %arg4: memref<1x256xf32, #tpu.memory_space<vmem>>, %arg5: memref<64x64xbf16, #tpu.memory_space<vmem>>, %arg6: memref<1x8x128xf32, #tpu.memory_space<vmem>>, %arg7: memref<1x256x128xbf16, #tpu.memory_space<vmem>>, %arg8: memref<2x2x128xf32, #tpu.memory_space<vmem>>, %arg9: memref<256x128xbf16, #tpu.memory_space<vmem>>, %arg10: memref<1x128xf32, #tpu.memory_space<vmem>>, %arg11: memref<64x128xf32, #tpu.memory_space<vmem>>, %arg12: memref<2x64x128xf32, #tpu.memory_space<vmem>>, %arg13: memref<64x128xf32, #tpu.memory_space<vmem>>) attributes {dimension_semantics = [#tpu.dimension_semantics<arbitrary>, #tpu.dimension_semantics<arbitrary>], iteration_bounds = array<i64: 2, 2>, scalar_prefetch = 0 : i64, scratch_operands = 2 : i64, tpu.core_type = #tpu.core_type<tc>, window_params = [{pipeline_mode = #tpu.pipeline_mode<synchronous>, transform_indices = @transform_0, window_bounds = array<i64: 64, 128>}, {pipeline_mode = #tpu.pipeline_mode<synchronous>, transform_indices = @transform_1, window_bounds = array<i64: 128, 256>}, {pipeline_mode = #tpu.pipeline_mode<synchronous>, transform_indices = @transform_2, window_bounds = array<i64: 1, 256>}, {pipeline_mode = #tpu.pipeline_mode<synchronous>, transform_indices = @transform_3, window_bounds = array<i64: 64, 64>}, {transform_indices = @transform_4, window_bounds = array<i64: 1, 8, 128>}, {transform_indices = @transform_5, window_bounds = array<i64: 1, 256, 128>}, {pipeline_mode = #tpu.pipeline_mode<synchronous>, transform_indices = @transform_6, window_bounds = array<i64: 2, 2, 128>}, {pipeline_mode = #tpu.pipeline_mode<synchronous>, transform_indices = @transform_7, window_bounds = array<i64: 256, 128>}, {pipeline_mode = #tpu.pipeline_mode<synchronous>, transform_indices = @transform_8, window_bounds = array<i64: 1, 128>}, {pipeline_mode = #tpu.pipeline_mode<synchronous>, transform_indices = @transform_9, window_bounds = array<i64: 64, 128>}]} {
    %0 = tpu.iota {dimensions = array<i32: 1>} : vector<1x128xi32>
    %c16_i32 = arith.constant 16 : i32
    %1 = vector.broadcast %c16_i32 : i32 to vector<1x128xi32>
    %2 = arith.cmpi slt, %0, %1 : vector<1x128xi32>
    %3 = arith.extui %2 : vector<1x128xi1> to vector<1x128xi32>
    %4 = arith.sitofp %3 : vector<1x128xi32> to vector<1x128xf32>
    %c0_i32 = arith.constant 0 : i32
    %5 = arith.cmpi eq, %arg0, %c0_i32 : i32
    %c0_i32_0 = arith.constant 0 : i32
    %6 = arith.cmpi eq, %arg1, %c0_i32_0 : i32
    %7 = arith.andi %5, %6 : i1
    %8 = arith.extui %7 : i1 to i32
    %c0_i32_1 = arith.constant 0 : i32
    %9 = arith.cmpi ne, %8, %c0_i32_1 : i32
    scf.if %9 {
      %c0_28 = arith.constant 0 : index
      %c0_29 = arith.constant 0 : index
      %67 = vector.load %arg2[%c0_28, %c0_29] : memref<64x128xbf16, #tpu.memory_space<vmem>>, vector<64x128xbf16>
      %c0_30 = arith.constant 0 : index
      %c0_31 = arith.constant 0 : index
      %68 = vector.load %arg3[%c0_30, %c0_31] : memref<128x256xbf16, #tpu.memory_space<vmem>>, vector<128x256xbf16>
      %cst_32 = arith.constant dense<0.000000e+00> : vector<64x256xf32>
      %69 = tpu.matmul %67, %68, %cst_32 {dimension_numbers = #tpu.dot_dimension_numbers<[1], [0], [0], [1], [0, 0, 1, 1], [], []>} : vector<64x128xbf16>, vector<128x256xbf16>, vector<64x256xf32> -> vector<64x256xf32>
      %c0_33 = arith.constant 0 : index
      %c0_34 = arith.constant 0 : index
      %70 = vector.load %arg4[%c0_33, %c0_34] : memref<1x256xf32, #tpu.memory_space<vmem>>, vector<1x256xf32>
      %71 = vector.broadcast %70 : vector<1x256xf32> to vector<64x256xf32>
      %72 = arith.addf %69, %71 : vector<64x256xf32>
      %73 = vector.extract_strided_slice %72 {offsets = [0, 0], sizes = [64, 128], strides = [1, 1]} : vector<64x256xf32> to vector<64x128xf32>
      %c0_35 = arith.constant 0 : index
      %c0_36 = arith.constant 0 : index
      %c0_37 = arith.constant 0 : index
      %74 = vector.load %arg12[%c0_35, %c0_36, %c0_37] : memref<2x64x128xf32, #tpu.memory_space<vmem>>, vector<1x64x128xf32>
      %75 = vector.shape_cast %74 : vector<1x64x128xf32> to vector<64x128xf32>
      %76 = vector.shape_cast %73 : vector<64x128xf32> to vector<1x64x128xf32>
      tpu.vector_store %arg12[%c0_35, %c0_36, %c0_37], %76 {strides = array<i32>} : memref<2x64x128xf32, #tpu.memory_space<vmem>>, vector<1x64x128xf32>,
      %77 = vector.extract_strided_slice %72 {offsets = [0, 128], sizes = [64, 128], strides = [1, 1]} : vector<64x256xf32> to vector<64x128xf32>
      %c1 = arith.constant 1 : index
      %c0_38 = arith.constant 0 : index
      %c0_39 = arith.constant 0 : index
      %78 = vector.load %arg12[%c1, %c0_38, %c0_39] : memref<2x64x128xf32, #tpu.memory_space<vmem>>, vector<1x64x128xf32>
      %79 = vector.shape_cast %78 : vector<1x64x128xf32> to vector<64x128xf32>
      %80 = vector.shape_cast %77 : vector<64x128xf32> to vector<1x64x128xf32>
      tpu.vector_store %arg12[%c1, %c0_38, %c0_39], %80 {strides = array<i32>} : memref<2x64x128xf32, #tpu.memory_space<vmem>>, vector<1x64x128xf32>,
    } else {
    }
    %c0_i32_2 = arith.constant 0 : i32
    %10 = arith.cmpi eq, %arg1, %c0_i32_2 : i32
    %11 = arith.extui %10 : i1 to i32
    %c0_i32_3 = arith.constant 0 : i32
    %12 = arith.cmpi ne, %11, %c0_i32_3 : i32
    scf.if %12 {
      %cst_28 = arith.constant 0.000000e+00 : f32
      %67 = vector.broadcast %cst_28 : f32 to vector<64x128xf32>
      %c1 = arith.constant 1 : index
      %c0_29 = arith.constant 0 : index
      %c0_30 = arith.constant 0 : index
      %68 = vector.load %arg12[%c1, %c0_29, %c0_30] : memref<2x64x128xf32, #tpu.memory_space<vmem>>, vector<1x64x128xf32>
      %69 = vector.shape_cast %68 : vector<1x64x128xf32> to vector<64x128xf32>
      %70 = arith.addf %67, %69 : vector<64x128xf32>
      %c0_31 = arith.constant 0 : index
      %c0_32 = arith.constant 0 : index
      %71 = vector.load %arg13[%c0_31, %c0_32] : memref<64x128xf32, #tpu.memory_space<vmem>>, vector<64x128xf32>
      tpu.vector_store %arg13[%c0_31, %c0_32], %70 {strides = array<i32>} : memref<64x128xf32, #tpu.memory_space<vmem>>, vector<64x128xf32>,
    } else {
    }
    %c0 = arith.constant 0 : index
    %c0_4 = arith.constant 0 : index
    %c0_5 = arith.constant 0 : index
    %13 = vector.load %arg6[%c0, %c0_4, %c0_5] : memref<1x8x128xf32, #tpu.memory_space<vmem>>, vector<1x8x128xf32>
    %14 = vector.shape_cast %13 : vector<1x8x128xf32> to vector<8x128xf32>
    %15 = vector.extract_strided_slice %14 {offsets = [0, 0], sizes = [1, 128], strides = [1, 1]} : vector<8x128xf32> to vector<1x128xf32>
    %16 = vector.extract_strided_slice %14 {offsets = [1, 0], sizes = [1, 128], strides = [1, 1]} : vector<8x128xf32> to vector<1x128xf32>
    %17 = vector.extract_strided_slice %14 {offsets = [2, 0], sizes = [1, 128], strides = [1, 1]} : vector<8x128xf32> to vector<1x128xf32>
    %c0_6 = arith.constant 0 : index
    %c0_7 = arith.constant 0 : index
    %18 = vector.load %arg13[%c0_6, %c0_7] : memref<64x128xf32, #tpu.memory_space<vmem>>, vector<64x128xf32>
    %cst = arith.constant dense<0.000000e+00> : vector<64xf32>
    %19 = vector.multi_reduction <add>, %18, %cst [1] : vector<64x128xf32> to vector<64xf32>
    %20 = vector.shape_cast %19 : vector<64xf32> to vector<64x1xf32>
    %cst_8 = arith.constant 6.250000e-02 : f32
    %21 = vector.broadcast %cst_8 : f32 to vector<64x1xf32>
    %22 = arith.mulf %20, %21 : vector<64x1xf32>
    %23 = vector.broadcast %22 : vector<64x1xf32> to vector<64x128xf32>
    %24 = arith.subf %18, %23 : vector<64x128xf32>
    %25 = vector.broadcast %4 : vector<1x128xf32> to vector<64x128xf32>
    %26 = arith.mulf %24, %25 : vector<64x128xf32>
    %27 = arith.mulf %26, %26 : vector<64x128xf32>
    %cst_9 = arith.constant dense<0.000000e+00> : vector<64xf32>
    %28 = vector.multi_reduction <add>, %27, %cst_9 [1] : vector<64x128xf32> to vector<64xf32>
    %29 = vector.shape_cast %28 : vector<64xf32> to vector<64x1xf32>
    %cst_10 = arith.constant 6.250000e-02 : f32
    %30 = vector.broadcast %cst_10 : f32 to vector<64x1xf32>
    %31 = arith.mulf %29, %30 : vector<64x1xf32>
    %cst_11 = arith.constant 9.99999974E-6 : f32
    %32 = vector.broadcast %cst_11 : f32 to vector<64x1xf32>
    %33 = arith.addf %31, %32 : vector<64x1xf32>
    %34 = math.rsqrt %33 : vector<64x1xf32>
    %35 = vector.broadcast %34 : vector<64x1xf32> to vector<64x128xf32>
    %36 = arith.mulf %26, %35 : vector<64x128xf32>
    %37 = vector.broadcast %15 : vector<1x128xf32> to vector<64x128xf32>
    %38 = arith.mulf %36, %37 : vector<64x128xf32>
    %39 = vector.broadcast %16 : vector<1x128xf32> to vector<64x128xf32>
    %40 = arith.addf %38, %39 : vector<64x128xf32>
    %cst_12 = arith.constant 0.000000e+00 : f32
    %41 = vector.broadcast %cst_12 : f32 to vector<64x128xf32>
    %42 = arith.maximumf %40, %41 : vector<64x128xf32>
    %43 = arith.truncf %42 : vector<64x128xf32> to vector<64x128xbf16>
    %c0_13 = arith.constant 0 : index
    %c0_14 = arith.constant 0 : index
    %44 = vector.load %arg5[%c0_13, %c0_14] : memref<64x64xbf16, #tpu.memory_space<vmem>>, vector<64x64xbf16>
    %cst_15 = arith.constant dense<0.000000e+00> : vector<64x128xf32>
    %45 = tpu.matmul %44, %43, %cst_15 {dimension_numbers = #tpu.dot_dimension_numbers<[1], [0], [0], [1], [0, 0, 1, 1], [], []>} : vector<64x64xbf16>, vector<64x128xbf16>, vector<64x128xf32> -> vector<64x128xf32>
    %46 = arith.truncf %45 : vector<64x128xf32> to vector<64x128xbf16>
    %47 = tpu.concatenate %46, %43 in 1 : vector<64x128xbf16>, vector<64x128xbf16> -> vector<64x256xbf16>
    %c0_16 = arith.constant 0 : index
    %c0_17 = arith.constant 0 : index
    %c0_18 = arith.constant 0 : index
    %48 = vector.load %arg7[%c0_16, %c0_17, %c0_18] : memref<1x256x128xbf16, #tpu.memory_space<vmem>>, vector<1x256x128xbf16>
    %49 = vector.shape_cast %48 : vector<1x256x128xbf16> to vector<256x128xbf16>
    %cst_19 = arith.constant dense<0.000000e+00> : vector<64x128xf32>
    %50 = tpu.matmul %47, %49, %cst_19 {dimension_numbers = #tpu.dot_dimension_numbers<[1], [0], [0], [1], [0, 0, 1, 1], [], []>} : vector<64x256xbf16>, vector<256x128xbf16>, vector<64x128xf32> -> vector<64x128xf32>
    %51 = vector.broadcast %17 : vector<1x128xf32> to vector<64x128xf32>
    %52 = arith.addf %50, %51 : vector<64x128xf32>
    %53 = arith.index_cast %arg1 : i32 to index
    %c0_20 = arith.constant 0 : index
    %c0_21 = arith.constant 0 : index
    %54 = vector.load %arg12[%53, %c0_20, %c0_21] : memref<2x64x128xf32, #tpu.memory_space<vmem>>, vector<1x64x128xf32>
    %55 = vector.shape_cast %54 : vector<1x64x128xf32> to vector<64x128xf32>
    %56 = arith.addf %55, %52 : vector<64x128xf32>
    %57 = arith.index_cast %arg1 : i32 to index
    %c0_22 = arith.constant 0 : index
    %c0_23 = arith.constant 0 : index
    %58 = vector.load %arg12[%57, %c0_22, %c0_23] : memref<2x64x128xf32, #tpu.memory_space<vmem>>, vector<1x64x128xf32>
    %59 = vector.shape_cast %58 : vector<1x64x128xf32> to vector<64x128xf32>
    %60 = vector.shape_cast %56 : vector<64x128xf32> to vector<1x64x128xf32>
    tpu.vector_store %arg12[%57, %c0_22, %c0_23], %60 {strides = array<i32>} : memref<2x64x128xf32, #tpu.memory_space<vmem>>, vector<1x64x128xf32>,
    %c0_24 = arith.constant 0 : index
    %c0_25 = arith.constant 0 : index
    %61 = vector.load %arg13[%c0_24, %c0_25] : memref<64x128xf32, #tpu.memory_space<vmem>>, vector<64x128xf32>
    tpu.vector_store %arg13[%c0_24, %c0_25], %56 {strides = array<i32>} : memref<64x128xf32, #tpu.memory_space<vmem>>, vector<64x128xf32>,
    %c1_i32 = arith.constant 1 : i32
    %62 = arith.cmpi eq, %arg0, %c1_i32 : i32
    %c1_i32_26 = arith.constant 1 : i32
    %63 = arith.cmpi eq, %arg1, %c1_i32_26 : i32
    %64 = arith.andi %62, %63 : i1
    %65 = arith.extui %64 : i1 to i32
    %c0_i32_27 = arith.constant 0 : i32
    %66 = arith.cmpi ne, %65, %c0_i32_27 : i32
    scf.if %66 {
      %c0_28 = arith.constant 0 : index
      %c0_29 = arith.constant 0 : index
      %c0_30 = arith.constant 0 : index
      %67 = vector.load %arg8[%c0_28, %c0_29, %c0_30] : memref<2x2x128xf32, #tpu.memory_space<vmem>>, vector<2x2x128xf32>
      %cst_31 = arith.constant 0.000000e+00 : f32
      %68 = vector.broadcast %cst_31 : f32 to vector<64x1xf32>
      %c0_32 = arith.constant 0 : index
      %c0_33 = arith.constant 0 : index
      %c0_34 = arith.constant 0 : index
      %69 = vector.load %arg12[%c0_32, %c0_33, %c0_34] : memref<2x64x128xf32, #tpu.memory_space<vmem>>, vector<1x64x128xf32>
      %70 = vector.shape_cast %69 : vector<1x64x128xf32> to vector<64x128xf32>
      %cst_35 = arith.constant dense<0.000000e+00> : vector<64xf32>
      %71 = vector.multi_reduction <add>, %70, %cst_35 [1] : vector<64x128xf32> to vector<64xf32>
      %72 = vector.shape_cast %71 : vector<64xf32> to vector<64x1xf32>
      %73 = arith.addf %68, %72 : vector<64x1xf32>
      %c1 = arith.constant 1 : index
      %c0_36 = arith.constant 0 : index
      %c0_37 = arith.constant 0 : index
      %74 = vector.load %arg12[%c1, %c0_36, %c0_37] : memref<2x64x128xf32, #tpu.memory_space<vmem>>, vector<1x64x128xf32>
      %75 = vector.shape_cast %74 : vector<1x64x128xf32> to vector<64x128xf32>
      %cst_38 = arith.constant dense<0.000000e+00> : vector<64xf32>
      %76 = vector.multi_reduction <add>, %75, %cst_38 [1] : vector<64x128xf32> to vector<64xf32>
      %77 = vector.shape_cast %76 : vector<64xf32> to vector<64x1xf32>
      %78 = arith.addf %73, %77 : vector<64x1xf32>
      %cst_39 = arith.constant 3.125000e-02 : f32
      %79 = vector.broadcast %cst_39 : f32 to vector<64x1xf32>
      %80 = arith.mulf %78, %79 : vector<64x1xf32>
      %cst_40 = arith.constant 0.000000e+00 : f32
      %81 = vector.broadcast %cst_40 : f32 to vector<64x1xf32>
      %c0_41 = arith.constant 0 : index
      %c0_42 = arith.constant 0 : index
      %c0_43 = arith.constant 0 : index
      %82 = vector.load %arg12[%c0_41, %c0_42, %c0_43] : memref<2x64x128xf32, #tpu.memory_space<vmem>>, vector<1x64x128xf32>
      %83 = vector.shape_cast %82 : vector<1x64x128xf32> to vector<64x128xf32>
      %84 = vector.broadcast %80 : vector<64x1xf32> to vector<64x128xf32>
      %85 = arith.subf %83, %84 : vector<64x128xf32>
      %86 = vector.broadcast %4 : vector<1x128xf32> to vector<64x128xf32>
      %87 = arith.mulf %85, %86 : vector<64x128xf32>
      %88 = arith.mulf %87, %87 : vector<64x128xf32>
      %cst_44 = arith.constant dense<0.000000e+00> : vector<64xf32>
      %89 = vector.multi_reduction <add>, %88, %cst_44 [1] : vector<64x128xf32> to vector<64xf32>
      %90 = vector.shape_cast %89 : vector<64xf32> to vector<64x1xf32>
      %91 = arith.addf %81, %90 : vector<64x1xf32>
      %c1_45 = arith.constant 1 : index
      %c0_46 = arith.constant 0 : index
      %c0_47 = arith.constant 0 : index
      %92 = vector.load %arg12[%c1_45, %c0_46, %c0_47] : memref<2x64x128xf32, #tpu.memory_space<vmem>>, vector<1x64x128xf32>
      %93 = vector.shape_cast %92 : vector<1x64x128xf32> to vector<64x128xf32>
      %94 = vector.broadcast %80 : vector<64x1xf32> to vector<64x128xf32>
      %95 = arith.subf %93, %94 : vector<64x128xf32>
      %96 = vector.broadcast %4 : vector<1x128xf32> to vector<64x128xf32>
      %97 = arith.mulf %95, %96 : vector<64x128xf32>
      %98 = arith.mulf %97, %97 : vector<64x128xf32>
      %cst_48 = arith.constant dense<0.000000e+00> : vector<64xf32>
      %99 = vector.multi_reduction <add>, %98, %cst_48 [1] : vector<64x128xf32> to vector<64xf32>
      %100 = vector.shape_cast %99 : vector<64xf32> to vector<64x1xf32>
      %101 = arith.addf %91, %100 : vector<64x1xf32>
      %cst_49 = arith.constant 3.125000e-02 : f32
      %102 = vector.broadcast %cst_49 : f32 to vector<64x1xf32>
      %103 = arith.mulf %101, %102 : vector<64x1xf32>
      %cst_50 = arith.constant 9.99999974E-6 : f32
      %104 = vector.broadcast %cst_50 : f32 to vector<64x1xf32>
      %105 = arith.addf %103, %104 : vector<64x1xf32>
      %106 = math.rsqrt %105 : vector<64x1xf32>
      %c0_51 = arith.constant 0 : index
      %c0_52 = arith.constant 0 : index
      %c0_53 = arith.constant 0 : index
      %107 = vector.load %arg12[%c0_51, %c0_52, %c0_53] : memref<2x64x128xf32, #tpu.memory_space<vmem>>, vector<1x64x128xf32>
      %108 = vector.shape_cast %107 : vector<1x64x128xf32> to vector<64x128xf32>
      %109 = vector.broadcast %80 : vector<64x1xf32> to vector<64x128xf32>
      %110 = arith.subf %108, %109 : vector<64x128xf32>
      %111 = vector.broadcast %4 : vector<1x128xf32> to vector<64x128xf32>
      %112 = arith.mulf %110, %111 : vector<64x128xf32>
      %113 = vector.broadcast %106 : vector<64x1xf32> to vector<64x128xf32>
      %114 = arith.mulf %112, %113 : vector<64x128xf32>
      %115 = vector.extract_strided_slice %67 {offsets = [0, 0, 0], sizes = [1, 1, 128], strides = [1, 1, 1]} : vector<2x2x128xf32> to vector<1x1x128xf32>
      %116 = vector.shape_cast %115 : vector<1x1x128xf32> to vector<1x128xf32>
      %117 = vector.broadcast %116 : vector<1x128xf32> to vector<64x128xf32>
      %118 = arith.mulf %114, %117 : vector<64x128xf32>
      %119 = vector.extract_strided_slice %67 {offsets = [0, 1, 0], sizes = [1, 1, 128], strides = [1, 1, 1]} : vector<2x2x128xf32> to vector<1x1x128xf32>
      %120 = vector.shape_cast %119 : vector<1x1x128xf32> to vector<1x128xf32>
      %121 = vector.broadcast %120 : vector<1x128xf32> to vector<64x128xf32>
      %122 = arith.addf %118, %121 : vector<64x128xf32>
      %cst_54 = arith.constant 0.000000e+00 : f32
      %123 = vector.broadcast %cst_54 : f32 to vector<64x128xf32>
      %124 = arith.maximumf %122, %123 : vector<64x128xf32>
      %125 = arith.truncf %124 : vector<64x128xf32> to vector<64x128xbf16>
      %c1_55 = arith.constant 1 : index
      %c0_56 = arith.constant 0 : index
      %c0_57 = arith.constant 0 : index
      %126 = vector.load %arg12[%c1_55, %c0_56, %c0_57] : memref<2x64x128xf32, #tpu.memory_space<vmem>>, vector<1x64x128xf32>
      %127 = vector.shape_cast %126 : vector<1x64x128xf32> to vector<64x128xf32>
      %128 = vector.broadcast %80 : vector<64x1xf32> to vector<64x128xf32>
      %129 = arith.subf %127, %128 : vector<64x128xf32>
      %130 = vector.broadcast %4 : vector<1x128xf32> to vector<64x128xf32>
      %131 = arith.mulf %129, %130 : vector<64x128xf32>
      %132 = vector.broadcast %106 : vector<64x1xf32> to vector<64x128xf32>
      %133 = arith.mulf %131, %132 : vector<64x128xf32>
      %134 = vector.extract_strided_slice %67 {offsets = [1, 0, 0], sizes = [1, 1, 128], strides = [1, 1, 1]} : vector<2x2x128xf32> to vector<1x1x128xf32>
      %135 = vector.shape_cast %134 : vector<1x1x128xf32> to vector<1x128xf32>
      %136 = vector.broadcast %135 : vector<1x128xf32> to vector<64x128xf32>
      %137 = arith.mulf %133, %136 : vector<64x128xf32>
      %138 = vector.extract_strided_slice %67 {offsets = [1, 1, 0], sizes = [1, 1, 128], strides = [1, 1, 1]} : vector<2x2x128xf32> to vector<1x1x128xf32>
      %139 = vector.shape_cast %138 : vector<1x1x128xf32> to vector<1x128xf32>
      %140 = vector.broadcast %139 : vector<1x128xf32> to vector<64x128xf32>
      %141 = arith.addf %137, %140 : vector<64x128xf32>
      %cst_58 = arith.constant 0.000000e+00 : f32
      %142 = vector.broadcast %cst_58 : f32 to vector<64x128xf32>
      %143 = arith.maximumf %141, %142 : vector<64x128xf32>
      %144 = arith.truncf %143 : vector<64x128xf32> to vector<64x128xbf16>
      %145 = tpu.concatenate %125, %144 in 1 : vector<64x128xbf16>, vector<64x128xbf16> -> vector<64x256xbf16>
      %c0_59 = arith.constant 0 : index
      %c0_60 = arith.constant 0 : index
      %146 = vector.load %arg9[%c0_59, %c0_60] : memref<256x128xbf16, #tpu.memory_space<vmem>>, vector<256x128xbf16>
      %cst_61 = arith.constant dense<0.000000e+00> : vector<64x128xf32>
      %147 = tpu.matmul %145, %146, %cst_61 {dimension_numbers = #tpu.dot_dimension_numbers<[1], [0], [0], [1], [0, 0, 1, 1], [], []>} : vector<64x256xbf16>, vector<256x128xbf16>, vector<64x128xf32> -> vector<64x128xf32>
      %c0_62 = arith.constant 0 : index
      %c0_63 = arith.constant 0 : index
      %148 = vector.load %arg10[%c0_62, %c0_63] : memref<1x128xf32, #tpu.memory_space<vmem>>, vector<1x128xf32>
      %149 = vector.broadcast %148 : vector<1x128xf32> to vector<64x128xf32>
      %150 = arith.addf %147, %149 : vector<64x128xf32>
      %c0_64 = arith.constant 0 : index
      %c0_65 = arith.constant 0 : index
      %151 = vector.load %arg11[%c0_64, %c0_65] : memref<64x128xf32, #tpu.memory_space<vmem>>, vector<64x128xf32>
      tpu.vector_store %arg11[%c0_64, %c0_65], %150 {strides = array<i32>} : memref<64x128xf32, #tpu.memory_space<vmem>>, vector<64x128xf32>,
    } else {
    }
    return
  }
  func.func @transform_0(%arg0: i32, %arg1: i32) -> (i32, i32) {
    %c0_i32 = arith.constant 0 : i32
    %c0_i32_0 = arith.constant 0 : i32
    %c0_i32_1 = arith.constant 0 : i32
    return %c0_i32, %c0_i32_0 : i32, i32
  }
  func.func @transform_1(%arg0: i32, %arg1: i32) -> (i32, i32) {
    %c0_i32 = arith.constant 0 : i32
    %c0_i32_0 = arith.constant 0 : i32
    %c0_i32_1 = arith.constant 0 : i32
    return %c0_i32, %c0_i32_0 : i32, i32
  }
  func.func @transform_2(%arg0: i32, %arg1: i32) -> (i32, i32) {
    %c0_i32 = arith.constant 0 : i32
    %c0_i32_0 = arith.constant 0 : i32
    %c0_i32_1 = arith.constant 0 : i32
    return %c0_i32, %c0_i32_0 : i32, i32
  }
  func.func @transform_3(%arg0: i32, %arg1: i32) -> (i32, i32) {
    %c0_i32 = arith.constant 0 : i32
    %c0_i32_0 = arith.constant 0 : i32
    %c0_i32_1 = arith.constant 0 : i32
    return %c0_i32, %c0_i32_0 : i32, i32
  }
  func.func @transform_4(%arg0: i32, %arg1: i32) -> (i32, i32, i32) {
    %c2_i32 = arith.constant 2 : i32
    %0 = arith.muli %arg0, %c2_i32 : i32
    %1 = arith.addi %0, %arg1 : i32
    %c0_i32 = arith.constant 0 : i32
    %c0_i32_0 = arith.constant 0 : i32
    %c0_i32_1 = arith.constant 0 : i32
    return %1, %c0_i32, %c0_i32_0 : i32, i32, i32
  }
  func.func @transform_5(%arg0: i32, %arg1: i32) -> (i32, i32, i32) {
    %c2_i32 = arith.constant 2 : i32
    %0 = arith.muli %arg0, %c2_i32 : i32
    %1 = arith.addi %0, %arg1 : i32
    %c0_i32 = arith.constant 0 : i32
    %c0_i32_0 = arith.constant 0 : i32
    %c0_i32_1 = arith.constant 0 : i32
    return %1, %c0_i32, %c0_i32_0 : i32, i32, i32
  }
  func.func @transform_6(%arg0: i32, %arg1: i32) -> (i32, i32, i32) {
    %c0_i32 = arith.constant 0 : i32
    %c0_i32_0 = arith.constant 0 : i32
    %c0_i32_1 = arith.constant 0 : i32
    %c0_i32_2 = arith.constant 0 : i32
    return %c0_i32, %c0_i32_0, %c0_i32_1 : i32, i32, i32
  }
  func.func @transform_7(%arg0: i32, %arg1: i32) -> (i32, i32) {
    %c0_i32 = arith.constant 0 : i32
    %c0_i32_0 = arith.constant 0 : i32
    %c0_i32_1 = arith.constant 0 : i32
    return %c0_i32, %c0_i32_0 : i32, i32
  }
  func.func @transform_8(%arg0: i32, %arg1: i32) -> (i32, i32) {
    %c0_i32 = arith.constant 0 : i32
    %c0_i32_0 = arith.constant 0 : i32
    %c0_i32_1 = arith.constant 0 : i32
    return %c0_i32, %c0_i32_0 : i32, i32
  }
  func.func @transform_9(%arg0: i32, %arg1: i32) -> (i32, i32) {
    %c0_i32 = arith.constant 0 : i32
    %c0_i32_0 = arith.constant 0 : i32
    %c0_i32_1 = arith.constant 0 : i32
    return %c0_i32, %c0_i32_0 : i32, i32
  }
}

</mosaic_0001>

<llo_original>
// kernel: tpu_custom_call.1
$region0: #{tpu_custom_call.1}
  #allocation0 [shape = 'u32[]', space=smem, size = 0x4, offset = 0x4, fixed_abs, tag = 'smem constant byte address 0x4 - core index']
  #allocation1 [shape = 'u32[144,128]{1,0:T(1,128)}', space=vmem, size = 0x12000, scoped, tag = 'internal scratch']
  #allocation2 [shape = 'f32[2,64,128]{2,1,0:T(8,128)}', space=vmem, size = 0x10000, scoped, tag = 'scratch operand']
  #allocation3 [shape = 'f32[64,128]{1,0:T(8,128)}', space=vmem, size = 0x8000, scoped, tag = 'scratch operand']
  %s0 = inlined_call_operand.hbm [shape: bf16[64,128], index: 0, kind: input, shape index: {}]
  %s1 = inlined_call_operand.hbm [shape: bf16[128,256], index: 1, kind: input, shape index: {}]
  %s2 = inlined_call_operand.vmem [shape: f32[1,256], index: 2, kind: input, shape index: {}]
  %s3 = inlined_call_operand.hbm [shape: bf16[64,64], index: 3, kind: input, shape index: {}]
  %s4 = inlined_call_operand.hbm [shape: f32[4,8,128], index: 4, kind: input, shape index: {}]
  %s5 = inlined_call_operand.hbm [shape: bf16[4,256,128], index: 5, kind: input, shape index: {}]
  %s6 = inlined_call_operand.vmem [shape: f32[2,2,128], index: 6, kind: input, shape index: {}]
  %s7 = inlined_call_operand.hbm [shape: bf16[256,128], index: 7, kind: input, shape index: {}]
  %s8 = inlined_call_operand.vmem [shape: f32[1,128], index: 8, kind: input, shape index: {}]
  %s9 = inlined_call_operand.hbm [shape: f32[64,128], index: 9, kind: output, shape index: {}]
  %s10 = sld [smem:[#allocation0]]
  $region105: #{tpu_custom_call.1} parent=0
    _
  %s12 = ssub.s32 1, %s10
  %s13 = scalar_select 0, %s12, %s10
  $region1: #{tpu_custom_call.1} parent=0
    #allocation4 [shape = 'u8[16384]{0}', space=vmem, size = 0x4000, scoped, tag = 'input window, operand 0, single buffered']
    #allocation5 [shape = 's32[2]{0}', space=sflag, size = 0x8, scoped, tag = 'scoped memory for tpu_custom_call.1']
    #allocation6 [shape = 's32[2]{0}', space=sflag, size = 0x8, scoped, tag = 'scoped memory for tpu_custom_call.1']
    #allocation7 [shape = 'u8[65536]{0}', space=vmem, size = 0x10000, scoped, tag = 'input window, operand 1, single buffered']
    #allocation8 [shape = 's32[1]{0}', space=sflag, size = 0x4, scoped, tag = 'scoped memory for tpu_custom_call.1']
    #allocation9 [shape = 'u8[16384]{0}', space=vmem, size = 0x4000, scoped, tag = 'input window, operand 3, single buffered']
    #allocation10 [shape = 'u8[8192]{0}', space=vmem, size = 0x2000, scoped, tag = 'input window, operand 4']
    #allocation11 [shape = 's32[2]{0}', space=sflag, size = 0x8, scoped, tag = 'scoped memory for tpu_custom_call.1']
    #allocation12 [shape = 'u8[131072]{0}', space=vmem, size = 0x20000, scoped, tag = 'input window, operand 5']
    #allocation13 [shape = 'u8[65536]{0}', space=vmem, size = 0x10000, scoped, tag = 'input window, operand 7, single buffered']
    #allocation14 [shape = 's32[1]{0}', space=sflag, size = 0x4, scoped, tag = 'scoped memory for tpu_custom_call.1']
    #allocation15 [shape = 'u8[32768]{0}', space=vmem, size = 0x8000, scoped, tag = 'output window, operand 0, single buffered']
    %14 = vsyncpa [#allocation5], 0
    %15 = vsyncpa [#allocation8], 0
    %16 = vsyncpa [#allocation11], 0
    %s17 = scalar_lea.sflag [#allocation11], 1
    %18 = vsyncpa %s17, 0
    %19 = vsyncpa [#allocation14], 0
    %20 = vsyncpa [#allocation6], 0
    loop: start=0, step=1, limit=6
    $region2: #{tpu_custom_call.1} parent=1 // loop_pre_header
      _
    $region3: #{tpu_custom_call.1} parent=1 // loop_header
      %s22 = sphi 0, %s26
      %p23 = scmp.ge.s32.totalorder %s22, 6
      %s29 = sphi 0, %s41
      %s30 = sphi 0, %s37
      %s31 = sphi 0, %s29
      %s32 = sphi 0, %s30
      %s33 = sphi 0, %s31
      %s34 = sphi 0, %s32
      %s42 = sphi 0, %s42
      %s44 = sphi 0, %s42
      %s45 = sphi 0, %s44
      %s59 = sphi 0, %s45
      %s63 = sphi 0, %s63
      %s65 = sphi 0, %s63
      %s66 = sphi 0, %s65
      %s80 = sphi 0, %s66
      %s84 = sphi 0, %s84
      %s86 = sphi 0, %s84
      %s87 = sphi 0, %s86
      %s101 = sphi 0, %s87
      %s105 = sphi 0, %s105
      %s107 = sphi 0, %s105
      %s108 = sphi 0, %s107
      %s122 = sphi 0, %s108
      %s132 = sphi 0, %s134
      %s135 = sphi 0, %s132
      %s136 = sphi 0, %s135
      %s152 = sphi 0, %s136
      %s162 = sphi 0, %s164
      %s165 = sphi 0, %s162
      %s166 = sphi 0, %s165
      %s182 = sphi 0, %s166
      %s186 = sphi 0, %s186
      %s188 = sphi 0, %s186
      %s189 = sphi 0, %s188
      %s203 = sphi 0, %s189
      %s207 = sphi 0, %s207
      %s209 = sphi 0, %s207
      %s210 = sphi 0, %s209
      %s224 = sphi 0, %s210
      %s228 = sphi 0, %s228
      %s230 = sphi 0, %s228
      %s231 = sphi 0, %s230
      %s245 = sphi 0, %s231
      %s249 = sphi 0, %s249
      %s251 = sphi 0, %s249
      %s252 = sphi 0, %s251
      %s266 = sphi 0, %s252
    $region4: #{tpu_custom_call.1} parent=1 // loop_header_branch
      %25 = sbr.rel (%p23) target = $region8
    $region5: #{tpu_custom_call.1} parent=1 // loop_body
      %s27 = ssub.s32 %s22, 1
      %s28 = ssub.s32 %s22, 2
      %s35 = sadd.s32 1, %s30
      %p36 = scmp.ge.s32.totalorder %s35, 2
      %s37 = scalar_select %p36, 0, %s35
      %s38 = sadd.s32 1, %s29
      %s39 = scalar_select %p36, %s38, %s29
      %p40 = scmp.ge.s32.totalorder %s39, 2
      %s41 = scalar_select %p40, 0, %s39
      %s43 = sadd.s32 %s42, 1
      %p46 = scmp.eq.s32.totalorder %s22, 3
      %p47 = scmp.ne.s32.totalorder %s42, %s44
      %p48 = scmp.eq.s32.totalorder %s22, 0
      %p49 = por %p47, %p48
      %p50 = scmp.ne.s32.totalorder %s42, %s44
      %p51 = scmp.eq.s32.totalorder %s27, 3
      %p52 = por %p50, %p51
      %p53 = scmp.ne.s32.totalorder %s44, %s45
      %p54 = scmp.eq.s32.totalorder %s27, 0
      %p55 = por %p53, %p54
      %p56 = scmp.ne.s32.totalorder %s44, %s45
      %p57 = scmp.eq.s32.totalorder %s28, 3
      %p58 = por %p56, %p57
      %p60 = scmp.ne.s32.totalorder %s45, %s59
      %p61 = scmp.eq.s32.totalorder %s28, 0
      %p62 = por %p60, %p61
      %s64 = sadd.s32 %s63, 1
      %p67 = scmp.eq.s32.totalorder %s22, 3
      %p68 = scmp.ne.s32.totalorder %s63, %s65
      %p69 = scmp.eq.s32.totalorder %s22, 0
      %p70 = por %p68, %p69
      %p71 = scmp.ne.s32.totalorder %s63, %s65
      %p72 = scmp.eq.s32.totalorder %s27, 3
      %p73 = por %p71, %p72
      %p74 = scmp.ne.s32.totalorder %s65, %s66
      %p75 = scmp.eq.s32.totalorder %s27, 0
      %p76 = por %p74, %p75
      %p77 = scmp.ne.s32.totalorder %s65, %s66
      %p78 = scmp.eq.s32.totalorder %s28, 3
      %p79 = por %p77, %p78
      %p81 = scmp.ne.s32.totalorder %s66, %s80
      %p82 = scmp.eq.s32.totalorder %s28, 0
      %p83 = por %p81, %p82
      %s85 = sadd.s32 %s84, 1
      %p88 = scmp.eq.s32.totalorder %s22, 3
      %p89 = scmp.ne.s32.totalorder %s84, %s86
      %p90 = scmp.eq.s32.totalorder %s22, 0
      %p91 = por %p89, %p90
      %p92 = scmp.ne.s32.totalorder %s84, %s86
      %p93 = scmp.eq.s32.totalorder %s27, 3
      %p94 = por %p92, %p93
      %p95 = scmp.ne.s32.totalorder %s86, %s87
      %p96 = scmp.eq.s32.totalorder %s27, 0
      %p97 = por %p95, %p96
      %p98 = scmp.ne.s32.totalorder %s86, %s87
      %p99 = scmp.eq.s32.totalorder %s28, 3
      %p100 = por %p98, %p99
      %p102 = scmp.ne.s32.totalorder %s87, %s101
      %p103 = scmp.eq.s32.totalorder %s28, 0
      %p104 = por %p102, %p103
      %s106 = sadd.s32 %s105, 1
      %p109 = scmp.eq.s32.totalorder %s22, 3
      %p110 = scmp.ne.s32.totalorder %s105, %s107
      %p111 = scmp.eq.s32.totalorder %s22, 0
      %p112 = por %p110, %p111
      %p113 = scmp.ne.s32.totalorder %s105, %s107
      %p114 = scmp.eq.s32.totalorder %s27, 3
      %p115 = por %p113, %p114
      %p116 = scmp.ne.s32.totalorder %s107, %s108
      %p117 = scmp.eq.s32.totalorder %s27, 0
      %p118 = por %p116, %p117
      %p119 = scmp.ne.s32.totalorder %s107, %s108
      %p120 = scmp.eq.s32.totalorder %s28, 3
      %p121 = por %p119, %p120
      %p123 = scmp.ne.s32.totalorder %s108, %s122
      %p124 = scmp.eq.s32.totalorder %s28, 0
      %p125 = por %p123, %p124
      %s126 = smul.u32 %s29, 2
      %s127 = sadd.s32 %s126, %s30
      %s128 = smul.u32 %s41, 2
      %s129 = sadd.s32 %s128, %s37
      %s130 = ssub.s32 %s127, %s129
      %p131 = scmp.eq.s32.totalorder %s130, 0
      %s133 = sadd.s32 %s132, 1
      %s134 = scalar_select %p131, %s132, %s133
      %p137 = pneg %p131
      %p138 = scmp.eq.s32.totalorder %s22, 3
      %p139 = por %p137, %p138
      %p140 = scmp.ne.s32.totalorder %s132, %s135
      %p141 = scmp.eq.s32.totalorder %s22, 0
      %p142 = por %p140, %p141
      %p143 = scmp.ne.s32.totalorder %s132, %s135
      %p144 = scmp.eq.s32.totalorder %s27, 3
      %p145 = por %p143, %p144
      %p146 = scmp.ne.s32.totalorder %s135, %s136
      %p147 = scmp.eq.s32.totalorder %s27, 0
      %p148 = por %p146, %p147
      %p149 = scmp.ne.s32.totalorder %s135, %s136
      %p150 = scmp.eq.s32.totalorder %s28, 3
      %p151 = por %p149, %p150
      %p153 = scmp.ne.s32.totalorder %s136, %s152
      %p154 = scmp.eq.s32.totalorder %s28, 0
      %p155 = por %p153, %p154
      %s156 = smul.u32 %s29, 2
      %s157 = sadd.s32 %s156, %s30
      %s158 = smul.u32 %s41, 2
      %s159 = sadd.s32 %s158, %s37
      %s160 = ssub.s32 %s157, %s159
      %p161 = scmp.eq.s32.totalorder %s160, 0
      %s163 = sadd.s32 %s162, 1
      %s164 = scalar_select %p161, %s162, %s163
      %p167 = pneg %p161
      %p168 = scmp.eq.s32.totalorder %s22, 3
      %p169 = por %p167, %p168
      %p170 = scmp.ne.s32.totalorder %s162, %s165
      %p171 = scmp.eq.s32.totalorder %s22, 0
      %p172 = por %p170, %p171
      %p173 = scmp.ne.s32.totalorder %s162, %s165
      %p174 = scmp.eq.s32.totalorder %s27, 3
      %p175 = por %p173, %p174
      %p176 = scmp.ne.s32.totalorder %s165, %s166
      %p177 = scmp.eq.s32.totalorder %s27, 0
      %p178 = por %p176, %p177
      %p179 = scmp.ne.s32.totalorder %s165, %s166
      %p180 = scmp.eq.s32.totalorder %s28, 3
      %p181 = por %p179, %p180
      %p183 = scmp.ne.s32.totalorder %s166, %s182
      %p184 = scmp.eq.s32.totalorder %s28, 0
      %p185 = por %p183, %p184
      %s187 = sadd.s32 %s186, 1
      %p190 = scmp.eq.s32.totalorder %s22, 3
      %p191 = scmp.ne.s32.totalorder %s186, %s188
      %p192 = scmp.eq.s32.totalorder %s22, 0
      %p193 = por %p191, %p192
      %p194 = scmp.ne.s32.totalorder %s186, %s188
      %p195 = scmp.eq.s32.totalorder %s27, 3
      %p196 = por %p194, %p195
      %p197 = scmp.ne.s32.totalorder %s188, %s189
      %p198 = scmp.eq.s32.totalorder %s27, 0
      %p199 = por %p197, %p198
      %p200 = scmp.ne.s32.totalorder %s188, %s189
      %p201 = scmp.eq.s32.totalorder %s28, 3
      %p202 = por %p200, %p201
      %p204 = scmp.ne.s32.totalorder %s189, %s203
      %p205 = scmp.eq.s32.totalorder %s28, 0
      %p206 = por %p204, %p205
      %s208 = sadd.s32 %s207, 1
      %p211 = scmp.eq.s32.totalorder %s22, 3
      %p212 = scmp.ne.s32.totalorder %s207, %s209
      %p213 = scmp.eq.s32.totalorder %s22, 0
      %p214 = por %p212, %p213
      %p215 = scmp.ne.s32.totalorder %s207, %s209
      %p216 = scmp.eq.s32.totalorder %s27, 3
      %p217 = por %p215, %p216
      %p218 = scmp.ne.s32.totalorder %s209, %s210
      %p219 = scmp.eq.s32.totalorder %s27, 0
      %p220 = por %p218, %p219
      %p221 = scmp.ne.s32.totalorder %s209, %s210
      %p222 = scmp.eq.s32.totalorder %s28, 3
      %p223 = por %p221, %p222
      %p225 = scmp.ne.s32.totalorder %s210, %s224
      %p226 = scmp.eq.s32.totalorder %s28, 0
      %p227 = por %p225, %p226
      %s229 = sadd.s32 %s228, 1
      %p232 = scmp.eq.s32.totalorder %s22, 3
      %p233 = scmp.ne.s32.totalorder %s228, %s230
      %p234 = scmp.eq.s32.totalorder %s22, 0
      %p235 = por %p233, %p234
      %p236 = scmp.ne.s32.totalorder %s228, %s230
      %p237 = scmp.eq.s32.totalorder %s27, 3
      %p238 = por %p236, %p237
      %p239 = scmp.ne.s32.totalorder %s230, %s231
      %p240 = scmp.eq.s32.totalorder %s27, 0
      %p241 = por %p239, %p240
      %p242 = scmp.ne.s32.totalorder %s230, %s231
      %p243 = scmp.eq.s32.totalorder %s28, 3
      %p244 = por %p242, %p243
      %p246 = scmp.ne.s32.totalorder %s231, %s245
      %p247 = scmp.eq.s32.totalorder %s28, 0
      %p248 = por %p246, %p247
      %s250 = sadd.s32 %s249, 1
      %p253 = scmp.eq.s32.totalorder %s22, 3
      %p254 = scmp.ne.s32.totalorder %s249, %s251
      %p255 = scmp.eq.s32.totalorder %s22, 0
      %p256 = por %p254, %p255
      %p257 = scmp.ne.s32.totalorder %s249, %s251
      %p258 = scmp.eq.s32.totalorder %s27, 3
      %p259 = por %p257, %p258
      %p260 = scmp.ne.s32.totalorder %s251, %s252
      %p261 = scmp.eq.s32.totalorder %s27, 0
      %p262 = por %p260, %p261
      %p263 = scmp.ne.s32.totalorder %s251, %s252
      %p264 = scmp.eq.s32.totalorder %s28, 3
      %p265 = por %p263, %p264
      %p267 = scmp.ne.s32.totalorder %s252, %s266
      %p268 = scmp.eq.s32.totalorder %s28, 0
      %p269 = por %p267, %p268
      %p270 = scmp.le.s32.totalorder 1, %s22
      %p271 = scmp.lt.s32.totalorder %s22, 5
      %p272 = pnand %p270, %p271
      %p273 = pneg %p272
      // Predicated region
      $region9: #{tpu_custom_call.1} parent=5 // pred_check
        _
      $region10: #{tpu_custom_call.1} parent=5 // pred_check_branch
        %275 = sbr.rel (%p272) target = $region12
      $region11: #{tpu_custom_call.1} parent=5 // pred_region
        %s276 = ssub.s32 %s22, 1
        // Predicated region
        $region13: #{tpu_custom_call.1} parent=11 // pred_check
          %p277 = pneg %p55
        $region14: #{tpu_custom_call.1} parent=11 // pred_check_branch
          %279 = sbr.rel (%p277) target = $region16
        $region15: #{tpu_custom_call.1} parent=11 // pred_region
          %s281 = ssub.s32 512, 512
          %282 = vsyncadd [#allocation5], %s281
          %s283 = sshll.u32 [#allocation4], 4
          %s284 = int_to_ptr.vmem [resolvable:$true] %s283
          %289 = dma.hbm_to_vmem [thread:$0]  %s0, 512, %s284, [#allocation5], 64, 64, 4
        $region16: #{tpu_custom_call.1} parent=11 // pred_fallthru
          _
        // Predicated region
        $region17: #{tpu_custom_call.1} parent=11 // pred_check
          %p290 = pneg %p76
        $region18: #{tpu_custom_call.1} parent=11 // pred_check_branch
          %292 = sbr.rel (%p290) target = $region20
        $region19: #{tpu_custom_call.1} parent=11 // pred_region
          %s294 = ssub.s32 2048, 2048
          %295 = vsyncadd [#allocation8], %s294
          %s296 = sshll.u32 [#allocation7], 4
          %s297 = int_to_ptr.vmem [resolvable:$true] %s296
          %302 = dma.hbm_to_vmem [thread:$0]  %s1, 2048, %s297, [#allocation8], 128, 128, 8
        $region20: #{tpu_custom_call.1} parent=11 // pred_fallthru
          _
        // Predicated region
        $region21: #{tpu_custom_call.1} parent=11 // pred_check
          %p303 = pneg %p97
        $region22: #{tpu_custom_call.1} parent=11 // pred_check_branch
          %305 = sbr.rel (%p303) target = $region24
        $region23: #{tpu_custom_call.1} parent=11 // pred_region
          _
        $region24: #{tpu_custom_call.1} parent=11 // pred_fallthru
          _
        // Predicated region
        $region25: #{tpu_custom_call.1} parent=11 // pred_check
          %p306 = pneg %p118
        $region26: #{tpu_custom_call.1} parent=11 // pred_check_branch
          %308 = sbr.rel (%p306) target = $region28
        $region27: #{tpu_custom_call.1} parent=11 // pred_region
          %s310 = ssub.s32 512, 512
          %311 = vsyncadd [#allocation8], %s310
          %s312 = sshll.u32 [#allocation9], 4
          %s313 = int_to_ptr.vmem [resolvable:$true] %s312
          %318 = dma.hbm_to_vmem [thread:$0]  %s3, 512, %s313, [#allocation8], 64, 64, 4
        $region28: #{tpu_custom_call.1} parent=11 // pred_fallthru
          _
        // Predicated region
        $region29: #{tpu_custom_call.1} parent=11 // pred_check
          %p319 = pneg %p199
        $region30: #{tpu_custom_call.1} parent=11 // pred_check_branch
          %321 = sbr.rel (%p319) target = $region32
        $region31: #{tpu_custom_call.1} parent=11 // pred_region
          _
        $region32: #{tpu_custom_call.1} parent=11 // pred_fallthru
          _
        // Predicated region
        $region33: #{tpu_custom_call.1} parent=11 // pred_check
          %p322 = pneg %p220
        $region34: #{tpu_custom_call.1} parent=11 // pred_check_branch
          %324 = sbr.rel (%p322) target = $region36
        $region35: #{tpu_custom_call.1} parent=11 // pred_region
          %s326 = ssub.s32 2048, 2048
          %327 = vsyncadd [#allocation14], %s326
          %s328 = sshll.u32 [#allocation13], 4
          %s329 = int_to_ptr.vmem [resolvable:$true] %s328
          %334 = dma.hbm_to_vmem [thread:$0]  %s7, 2048, %s329, [#allocation14], 64, 64, 4
        $region36: #{tpu_custom_call.1} parent=11 // pred_fallthru
          _
        // Predicated region
        $region37: #{tpu_custom_call.1} parent=11 // pred_check
          %p335 = pneg %p241
        $region38: #{tpu_custom_call.1} parent=11 // pred_check_branch
          %337 = sbr.rel (%p335) target = $region40
        $region39: #{tpu_custom_call.1} parent=11 // pred_region
          _
        $region40: #{tpu_custom_call.1} parent=11 // pred_fallthru
          _
      $region12: #{tpu_custom_call.1} parent=5 // pred_fallthru
        _
      %p338 = scmp.lt.s32.totalorder %s22, 4
      // Predicated region
      $region41: #{tpu_custom_call.1} parent=5 // pred_check
        %p339 = pneg %p338
      $region42: #{tpu_custom_call.1} parent=5 // pred_check_branch
        %341 = sbr.rel (%p339) target = $region44
      $region43: #{tpu_custom_call.1} parent=5 // pred_region
        // Predicated region
        $region45: #{tpu_custom_call.1} parent=43 // pred_check
          %p342 = pneg %p142
        $region46: #{tpu_custom_call.1} parent=43 // pred_check_branch
          %344 = sbr.rel (%p342) target = $region48
        $region47: #{tpu_custom_call.1} parent=43 // pred_region
          %s345 = sand.u32 %s22, 1
          %s346 = scalar_lea.sflag [#allocation11], %s345
          %s347 = sand.u32 %s132, 1
          %s348 = smul.addr %s347, 8
          %s349 = scalar_lea.vmem [#allocation10], %s348
          %s350 = smul.u32 %s29, 2
          %s351 = sadd.s32 %s350, %s30
          %s353 = ssub.s32 128, 128
          %354 = vsyncadd %s346, %s353
          %s355 = smul.addr %s351, 128
          %s356 = scalar_lea.hbm %s4, %s355
          %s358 = sshll.u32 %s349, 4
          %s359 = int_to_ptr.vmem [resolvable:$true] %s358
          %361 = dma.hbm_to_vmem [thread:$0]  %s356, 128, %s359, %s346
        $region48: #{tpu_custom_call.1} parent=43 // pred_fallthru
          _
        // Predicated region
        $region49: #{tpu_custom_call.1} parent=43 // pred_check
          %p362 = pneg %p172
        $region50: #{tpu_custom_call.1} parent=43 // pred_check_branch
          %364 = sbr.rel (%p362) target = $region52
        $region51: #{tpu_custom_call.1} parent=43 // pred_region
          %s365 = sand.u32 %s22, 1
          %s366 = scalar_lea.sflag [#allocation11], %s365
          %s367 = sand.u32 %s162, 1
          %s368 = smul.addr %s367, 128
          %s369 = scalar_lea.vmem [#allocation12], %s368
          %s370 = smul.u32 %s29, 2
          %s371 = sadd.s32 %s370, %s30
          %s373 = ssub.s32 2048, 2048
          %374 = vsyncadd %s366, %s373
          %s375 = smul.addr %s371, 32
          %s376 = smul.addr %s375, 64
          %s377 = scalar_lea.hbm %s5, %s376
          %s378 = sshll.u32 %s369, 4
          %s379 = int_to_ptr.vmem [resolvable:$true] %s378
          %384 = dma.hbm_to_vmem [thread:$0]  %s377, 2048, %s379, %s366, 64, 64, 4
        $region52: #{tpu_custom_call.1} parent=43 // pred_fallthru
          _
      $region44: #{tpu_custom_call.1} parent=5 // pred_fallthru
        _
      %p385 = scmp.le.s32.totalorder 1, %s22
      %p386 = scmp.lt.s32.totalorder %s22, 5
      %p387 = pnand %p385, %p386
      %p388 = pneg %p387
      // Predicated region
      $region53: #{tpu_custom_call.1} parent=5 // pred_check
        _
      $region54: #{tpu_custom_call.1} parent=5 // pred_check_branch
        %390 = sbr.rel (%p387) target = $region56
      $region55: #{tpu_custom_call.1} parent=5 // pred_region
        %s391 = ssub.s32 %s22, 1
        // Predicated region
        $region57: #{tpu_custom_call.1} parent=55 // pred_check
          %p392 = pneg %p55
        $region58: #{tpu_custom_call.1} parent=55 // pred_check_branch
          %394 = sbr.rel (%p392) target = $region60
        $region59: #{tpu_custom_call.1} parent=55 // pred_region
          %395 = dma.done [#allocation5], 512
        $region60: #{tpu_custom_call.1} parent=55 // pred_fallthru
          _
        // Predicated region
        $region61: #{tpu_custom_call.1} parent=55 // pred_check
          %p396 = pneg %p76
        $region62: #{tpu_custom_call.1} parent=55 // pred_check_branch
          %398 = sbr.rel (%p396) target = $region64
        $region63: #{tpu_custom_call.1} parent=55 // pred_region
          %399 = dma.done [#allocation8], 2048
        $region64: #{tpu_custom_call.1} parent=55 // pred_fallthru
          _
        // Predicated region
        $region65: #{tpu_custom_call.1} parent=55 // pred_check
          %p400 = pneg %p118
        $region66: #{tpu_custom_call.1} parent=55 // pred_check_branch
          %402 = sbr.rel (%p400) target = $region68
        $region67: #{tpu_custom_call.1} parent=55 // pred_region
          %403 = dma.done [#allocation8], 512
        $region68: #{tpu_custom_call.1} parent=55 // pred_fallthru
          _
        %s404 = sand.u32 %s27, 1
        %s405 = scalar_lea.sflag [#allocation11], %s404
        %s406 = sand.u32 %s135, 1
        %s407 = smul.addr %s406, 8
        %s408 = scalar_lea.vmem [#allocation10], %s407
        // Predicated region
        $region69: #{tpu_custom_call.1} parent=55 // pred_check
          %p409 = pneg %p148
        $region70: #{tpu_custom_call.1} parent=55 // pred_check_branch
          %411 = sbr.rel (%p409) target = $region72
        $region71: #{tpu_custom_call.1} parent=55 // pred_region
          %412 = dma.done %s405, 128
        $region72: #{tpu_custom_call.1} parent=55 // pred_fallthru
          _
        %s413 = sand.u32 %s27, 1
        %s414 = scalar_lea.sflag [#allocation11], %s413
        %s415 = sand.u32 %s165, 1
        %s416 = smul.addr %s415, 128
        %s417 = scalar_lea.vmem [#allocation12], %s416
        // Predicated region
        $region73: #{tpu_custom_call.1} parent=55 // pred_check
          %p418 = pneg %p178
        $region74: #{tpu_custom_call.1} parent=55 // pred_check_branch
          %420 = sbr.rel (%p418) target = $region76
        $region75: #{tpu_custom_call.1} parent=55 // pred_region
          %421 = dma.done %s414, 2048
        $region76: #{tpu_custom_call.1} parent=55 // pred_fallthru
          _
        // Predicated region
        $region77: #{tpu_custom_call.1} parent=55 // pred_check
          %p422 = pneg %p220
        $region78: #{tpu_custom_call.1} parent=55 // pred_check_branch
          %424 = sbr.rel (%p422) target = $region80
        $region79: #{tpu_custom_call.1} parent=55 // pred_region
          %425 = dma.done [#allocation14], 2048
        $region80: #{tpu_custom_call.1} parent=55 // pred_fallthru
          _
        %p426 = pneg %p55
        %p427 = pneg %p52
        %p428 = pneg %p76
        %p429 = pneg %p73
        %p430 = pneg %p97
        %p431 = pneg %p94
        %p432 = pneg %p118
        %p433 = pneg %p115
        %s434 = sand.u32 %s27, 1
        %s435 = scalar_lea.sflag [#allocation11], %s434
        %s436 = sand.u32 %s135, 1
        %s437 = smul.addr %s436, 8
        %s438 = scalar_lea.vmem [#allocation10], %s437
        %p439 = pneg %p148
        %p440 = pneg %p145
        %s441 = sand.u32 %s27, 1
        %s442 = scalar_lea.sflag [#allocation11], %s441
        %s443 = sand.u32 %s165, 1
        %s444 = smul.addr %s443, 128
        %s445 = scalar_lea.vmem [#allocation12], %s444
        %p446 = pneg %p178
        %p447 = pneg %p175
        %p448 = pneg %p199
        %p449 = pneg %p196
        %p450 = pneg %p220
        %p451 = pneg %p217
        %p452 = pneg %p241
        %p453 = pneg %p238
        %p454 = pneg %p262
        %p455 = pneg %p259
        %s456 = smul.u32 %s31, 2
        %s457 = sadd.s32 %s456, %s32
        %s458 = smul.u32 %s31, 2
        %s459 = sadd.s32 %s458, %s32
        %v461 = vlaneseq
        %v462 = vand.u32 %v461, 127
        %vm463 = vcmp.lt.s32.totalorder %v462, 16
        %v464 = vsel %vm463, 1, 0
        %v465 = vcvt.s32.f32 %v464
        %p466 = scmp.eq.s32.totalorder %s31, 0
        %p467 = scmp.eq.s32.totalorder %s32, 0
        %p468 = pnand %p466, %p467
        %p469 = pneg %p468
        // Predicated region
        $region81: #{tpu_custom_call.1} parent=55 // pred_check
          _
        $region82: #{tpu_custom_call.1} parent=55 // pred_check_branch
          %471 = sbr.rel (%p468) target = $region84
        $region83: #{tpu_custom_call.1} parent=55 // pred_region
          %v472 = vld [vmem:[#allocation4] sm:$0xf]
          %v473 = vld [vmem:[#allocation4 + $0x4] sm:$0xf]
          %v474 = vld [vmem:[#allocation4 + $0x8] sm:$0xf]
          %v475 = vld [vmem:[#allocation4 + $0xc] sm:$0xf]
          %v476 = vld [vmem:[#allocation4 + $0x10] sm:$0xf]
          %v477 = vld [vmem:[#allocation4 + $0x14] sm:$0xf]
          %v478 = vld [vmem:[#allocation4 + $0x18] sm:$0xf]
          %v479 = vld [vmem:[#allocation4 + $0x1c] sm:$0xf]
          %v480 = vld [vmem:[#allocation7] sm:$0xff]
          %v481 = vld [vmem:[#allocation7 + $0x8] sm:$0xff]
          %v482 = vld [vmem:[#allocation7 + $0x10] sm:$0xff]
          %v483 = vld [vmem:[#allocation7 + $0x18] sm:$0xff]
          %v484 = vld [vmem:[#allocation7 + $0x20] sm:$0xff]
          %v485 = vld [vmem:[#allocation7 + $0x28] sm:$0xff]
          %v486 = vld [vmem:[#allocation7 + $0x30] sm:$0xff]
          %v487 = vld [vmem:[#allocation7 + $0x38] sm:$0xff]
          %v488 = vld [vmem:[#allocation7 + $0x40] sm:$0xff]
          %v489 = vld [vmem:[#allocation7 + $0x48] sm:$0xff]
          %v490 = vld [vmem:[#allocation7 + $0x50] sm:$0xff]
          %v491 = vld [vmem:[#allocation7 + $0x58] sm:$0xff]
          %v492 = vld [vmem:[#allocation7 + $0x60] sm:$0xff]
          %v493 = vld [vmem:[#allocation7 + $0x68] sm:$0xff]
          %v494 = vld [vmem:[#allocation7 + $0x70] sm:$0xff]
          %v495 = vld [vmem:[#allocation7 + $0x78] sm:$0xff]
          %v496 = vld [vmem:[%s2] sm:$0x3]
          %v498 = vlaneseq
          %v499 = vshrl.u32 %v498, 7
          %v500 = vsub.s32 0, %v499
          %v501 = vrot.slane %v496, %v500
          %v502 = vlaneseq
          %v503 = vshrl.u32 %v502, 7
          %v504 = vsub.s32 1, %v503
          %v505 = vrot.slane %v496, %v504
          %v516 = vunpack.c.l.b16 %v472
          %v517 = vunpack.c.l.b16 %v473
          %v518 = vunpack.c.l.b16 %v474
          %v519 = vunpack.c.l.b16 %v475
          %v520 = vunpack.c.l.b16 %v476
          %v521 = vunpack.c.l.b16 %v477
          %v522 = vunpack.c.l.b16 %v478
          %v523 = vunpack.c.l.b16 %v479
          %v524 = vpack.c.b16 %v517, %v516
          %v525 = vpack.c.b16 %v519, %v518
          %v526 = vpack.c.b16 %v521, %v520
          %v527 = vpack.c.b16 %v523, %v522
          %v548 = vunpack.c.l.b16 %v480
          %v549 = vunpack.c.h.b16 %v480
          %v550 = vunpack.c.l.b16 %v481
          %v551 = vunpack.c.h.b16 %v481
          %v552 = vunpack.c.l.b16 %v482
          %v553 = vunpack.c.h.b16 %v482
          %v554 = vunpack.c.l.b16 %v483
          %v555 = vunpack.c.h.b16 %v483
          %v556 = vunpack.c.l.b16 %v484
          %v557 = vunpack.c.h.b16 %v484
          %v558 = vunpack.c.l.b16 %v485
          %v559 = vunpack.c.h.b16 %v485
          %v560 = vunpack.c.l.b16 %v486
          %v561 = vunpack.c.h.b16 %v486
          %v562 = vunpack.c.l.b16 %v487
          %v563 = vunpack.c.h.b16 %v487
          %v564 = vunpack.c.l.b16 %v488
          %v565 = vunpack.c.h.b16 %v488
          %v566 = vunpack.c.l.b16 %v489
          %v567 = vunpack.c.h.b16 %v489
          %v568 = vunpack.c.l.b16 %v490
          %v569 = vunpack.c.h.b16 %v490
          %v570 = vunpack.c.l.b16 %v491
          %v571 = vunpack.c.h.b16 %v491
          %v572 = vunpack.c.l.b16 %v492
          %v573 = vunpack.c.h.b16 %v492
          %v574 = vunpack.c.l.b16 %v493
          %v575 = vunpack.c.h.b16 %v493
          %v576 = vunpack.c.l.b16 %v494
          %v577 = vunpack.c.h.b16 %v494
          %v578 = vunpack.c.l.b16 %v495
          %v579 = vunpack.c.h.b16 %v495
          %v580 = vpack.c.b16 %v550, %v548
          %v581 = vpack.c.b16 %v551, %v549
          %v582 = vpack.c.b16 %v554, %v552
          %v583 = vpack.c.b16 %v555, %v553
          %v584 = vpack.c.b16 %v558, %v556
          %v585 = vpack.c.b16 %v559, %v557
          %v586 = vpack.c.b16 %v562, %v560
          %v587 = vpack.c.b16 %v563, %v561
          %v588 = vpack.c.b16 %v566, %v564
          %v589 = vpack.c.b16 %v567, %v565
          %v590 = vpack.c.b16 %v570, %v568
          %v591 = vpack.c.b16 %v571, %v569
          %v592 = vpack.c.b16 %v574, %v572
          %v593 = vpack.c.b16 %v575, %v573
          %v594 = vpack.c.b16 %v578, %v576
          %v595 = vpack.c.b16 %v579, %v577
          %612 = vmatprep.subr.bf16.mxu0 %v581
          %613 = vmatpush1.bf16.msra.mxu0 %v580
          %614 = vmatprep.subr.bf16.mxu0 %v583
          %615 = vmatpush1.bf16.msra.mxu0 %v582
          %616 = vmatprep.subr.bf16.mxu0 %v585
          %617 = vmatpush1.bf16.msra.mxu0 %v584
          %618 = vmatprep.subr.bf16.mxu0 %v587
          %619 = vmatpush1.bf16.msra.mxu0 %v586
          %620 = vmatprep.subr.bf16.mxu0 %v589
          %621 = vmatpush1.bf16.msra.mxu0 %v588
          %622 = vmatprep.subr.bf16.mxu0 %v591
          %623 = vmatpush1.bf16.msra.mxu0 %v590
          %624 = vmatprep.subr.bf16.mxu0 %v593
          %625 = vmatpush1.bf16.msra.mxu0 %v592
          %626 = vmatprep.subr.bf16.mxu0 %v595
          %627 = vmatpush1.bf16.msra.mxu0 %v594
          %628 = vmatprep.subr.bf16.mxu0 0
          %629 = vmatpush1.bf16.msra.mxu0 0
          %630 = vmatprep.subr.bf16.mxu0 0
          %631 = vmatpush1.bf16.msra.mxu0 0
          %632 = vmatprep.subr.bf16.mxu0 0
          %633 = vmatpush1.bf16.msra.mxu0 0
          %634 = vmatprep.subr.bf16.mxu0 0
          %635 = vmatpush1.bf16.msra.mxu0 0
          %636 = vmatprep.subr.bf16.mxu0 0
          %637 = vmatpush1.bf16.msra.mxu0 0
          %638 = vmatprep.subr.bf16.mxu0 0
          %639 = vmatpush1.bf16.msra.mxu0 0
          %640 = vmatprep.subr.bf16.mxu0 0
          %641 = vmatpush1.bf16.msra.mxu0 0
          %642 = vmatprep.subr.bf16.mxu0 0
          %643 = vmatpush1.bf16.msra.mxu0 0
          %644 = vmatprep.mubr.bf16.mxu0 0
          %645 = vmatmul.mubr.bf16.gmra.mrb[0].mxu0 %v524
          %v646 = vpop.f32.mrb[0].mxu0
          %v647 = vadd.f32 %v501, %v646
          %v648 = vpop.f32.mrb[0].mxu0
          %v649 = vadd.f32 %v505, %v648
          %v650 = vpop.f32.mrb[0].mxu0
          %v651 = vadd.f32 %v501, %v650
          %v652 = vpop.f32.mrb[0].mxu0
          %v653 = vadd.f32 %v505, %v652
          %654 = vmatprep.mubr.bf16.mxu0 0
          %655 = vmatmul.mubr.bf16.gmra.mrb[0].mxu0 %v525
          %v656 = vpop.f32.mrb[0].mxu0
          %v657 = vadd.f32 %v501, %v656
          %v658 = vpop.f32.mrb[0].mxu0
          %v659 = vadd.f32 %v505, %v658
          %v660 = vpop.f32.mrb[0].mxu0
          %v661 = vadd.f32 %v501, %v660
          %v662 = vpop.f32.mrb[0].mxu0
          %v663 = vadd.f32 %v505, %v662
          %664 = vmatprep.mubr.bf16.mxu0 0
          %665 = vmatmul.mubr.bf16.gmra.mrb[0].mxu0 %v526
          %v666 = vpop.f32.mrb[0].mxu0
          %v667 = vadd.f32 %v501, %v666
          %v668 = vpop.f32.mrb[0].mxu0
          %v669 = vadd.f32 %v505, %v668
          %v670 = vpop.f32.mrb[0].mxu0
          %v671 = vadd.f32 %v501, %v670
          %v672 = vpop.f32.mrb[0].mxu0
          %v673 = vadd.f32 %v505, %v672
          %674 = vmatprep.mubr.bf16.mxu0 0
          %675 = vmatmul.mubr.bf16.gmra.mrb[0].mxu0 %v527
          %v676 = vpop.f32.mrb[0].mxu0
          %v677 = vadd.f32 %v501, %v676
          %v678 = vpop.f32.mrb[0].mxu0
          %v679 = vadd.f32 %v505, %v678
          %v680 = vpop.f32.mrb[0].mxu0
          %v681 = vadd.f32 %v501, %v680
          %v682 = vpop.f32.mrb[0].mxu0
          %v683 = vadd.f32 %v505, %v682
          %684 = vdwg.mxu0
          %685 = vst [vmem:[#allocation2] sm:$0xff] %v647
          %686 = vst [vmem:[#allocation2 + $0x8] sm:$0xff] %v651
          %687 = vst [vmem:[#allocation2 + $0x10] sm:$0xff] %v657
          %688 = vst [vmem:[#allocation2 + $0x18] sm:$0xff] %v661
          %689 = vst [vmem:[#allocation2 + $0x20] sm:$0xff] %v667
          %690 = vst [vmem:[#allocation2 + $0x28] sm:$0xff] %v671
          %691 = vst [vmem:[#allocation2 + $0x30] sm:$0xff] %v677
          %692 = vst [vmem:[#allocation2 + $0x38] sm:$0xff] %v681
          %s693 = scalar_lea.vmem [#allocation2], 64
          %694 = vst [vmem:[%s693] sm:$0xff] %v649
          %695 = vst [vmem:[%s693 + $0x8] sm:$0xff] %v653
          %696 = vst [vmem:[%s693 + $0x10] sm:$0xff] %v659
          %697 = vst [vmem:[%s693 + $0x18] sm:$0xff] %v663
          %698 = vst [vmem:[%s693 + $0x20] sm:$0xff] %v669
          %699 = vst [vmem:[%s693 + $0x28] sm:$0xff] %v673
          %700 = vst [vmem:[%s693 + $0x30] sm:$0xff] %v679
          %701 = vst [vmem:[%s693 + $0x38] sm:$0xff] %v683
        $region84: #{tpu_custom_call.1} parent=55 // pred_fallthru
          _
        // Predicated region
        $region85: #{tpu_custom_call.1} parent=55 // pred_check
          %p702 = pneg %p467
        $region86: #{tpu_custom_call.1} parent=55 // pred_check_branch
          %704 = sbr.rel (%p702) target = $region88
        $region87: #{tpu_custom_call.1} parent=55 // pred_region
          %s705 = scalar_lea.vmem [#allocation2], 64
          %v706 = vld [vmem:[%s705] sm:$0xff]
          %v707 = vld [vmem:[%s705 + $0x8] sm:$0xff]
          %v708 = vld [vmem:[%s705 + $0x10] sm:$0xff]
          %v709 = vld [vmem:[%s705 + $0x18] sm:$0xff]
          %v710 = vld [vmem:[%s705 + $0x20] sm:$0xff]
          %v711 = vld [vmem:[%s705 + $0x28] sm:$0xff]
          %v712 = vld [vmem:[%s705 + $0x30] sm:$0xff]
          %v713 = vld [vmem:[%s705 + $0x38] sm:$0xff]
          %v714 = vadd.f32 %v706, 0.0
          %v715 = vadd.f32 %v707, 0.0
          %v716 = vadd.f32 %v708, 0.0
          %v717 = vadd.f32 %v709, 0.0
          %v718 = vadd.f32 %v710, 0.0
          %v719 = vadd.f32 %v711, 0.0
          %v720 = vadd.f32 %v712, 0.0
          %v721 = vadd.f32 %v713, 0.0
          %722 = vst [vmem:[#allocation3] sm:$0xff] %v714
          %723 = vst [vmem:[#allocation3 + $0x8] sm:$0xff] %v715
          %724 = vst [vmem:[#allocation3 + $0x10] sm:$0xff] %v716
          %725 = vst [vmem:[#allocation3 + $0x18] sm:$0xff] %v717
          %726 = vst [vmem:[#allocation3 + $0x20] sm:$0xff] %v718
          %727 = vst [vmem:[#allocation3 + $0x28] sm:$0xff] %v719
          %728 = vst [vmem:[#allocation3 + $0x30] sm:$0xff] %v720
          %729 = vst [vmem:[#allocation3 + $0x38] sm:$0xff] %v721
        $region88: #{tpu_custom_call.1} parent=55 // pred_fallthru
          _
        %v730 = vld [vmem:[%s408] sm:$0xff]
        %v731 = vld [vmem:[#allocation3] sm:$0xff]
        %v732 = vld [vmem:[#allocation3 + $0x8] sm:$0xff]
        %v733 = vld [vmem:[#allocation3 + $0x10] sm:$0xff]
        %v734 = vld [vmem:[#allocation3 + $0x18] sm:$0xff]
        %v735 = vld [vmem:[#allocation3 + $0x20] sm:$0xff]
        %v736 = vld [vmem:[#allocation3 + $0x28] sm:$0xff]
        %v737 = vld [vmem:[#allocation3 + $0x30] sm:$0xff]
        %v738 = vld [vmem:[#allocation3 + $0x38] sm:$0xff]
        %739 = vadd.xlane.f32.xlu0 %v731
        %v740 = vpop.xlane.xlu0 %739
        %741 = vadd.xlane.f32.xlu0 %v732
        %v742 = vpop.xlane.xlu0 %741
        %743 = vadd.xlane.f32.xlu0 %v733
        %v744 = vpop.xlane.xlu0 %743
        %745 = vadd.xlane.f32.xlu0 %v734
        %v746 = vpop.xlane.xlu0 %745
        %747 = vadd.xlane.f32.xlu0 %v735
        %v748 = vpop.xlane.xlu0 %747
        %749 = vadd.xlane.f32.xlu0 %v736
        %v750 = vpop.xlane.xlu0 %749
        %751 = vadd.xlane.f32.xlu0 %v737
        %v752 = vpop.xlane.xlu0 %751
        %753 = vadd.xlane.f32.xlu0 %v738
        %v754 = vpop.xlane.xlu0 %753
        %v755 = vmul.f32 %v740, 0.0625
        %v756 = vmul.f32 %v742, 0.0625
        %v757 = vmul.f32 %v744, 0.0625
        %v758 = vmul.f32 %v746, 0.0625
        %v759 = vmul.f32 %v748, 0.0625
        %v760 = vmul.f32 %v750, 0.0625
        %v761 = vmul.f32 %v752, 0.0625
        %v762 = vmul.f32 %v754, 0.0625
        %v763 = vsub.f32 %v731, %v755
        %v764 = vsub.f32 %v732, %v756
        %v765 = vsub.f32 %v733, %v757
        %v766 = vsub.f32 %v734, %v758
        %v767 = vsub.f32 %v735, %v759
        %v768 = vsub.f32 %v736, %v760
        %v769 = vsub.f32 %v737, %v761
        %v770 = vsub.f32 %v738, %v762
        %v771 = vmul.f32 %v763, %v465
        %v772 = vmul.f32 %v764, %v465
        %v773 = vmul.f32 %v765, %v465
        %v774 = vmul.f32 %v766, %v465
        %v775 = vmul.f32 %v767, %v465
        %v776 = vmul.f32 %v768, %v465
        %v777 = vmul.f32 %v769, %v465
        %v778 = vmul.f32 %v770, %v465
        %v779 = vmul.f32 %v771, %v771
        %v780 = vmul.f32 %v772, %v772
        %v781 = vmul.f32 %v773, %v773
        %v782 = vmul.f32 %v774, %v774
        %v783 = vmul.f32 %v775, %v775
        %v784 = vmul.f32 %v776, %v776
        %v785 = vmul.f32 %v777, %v777
        %v786 = vmul.f32 %v778, %v778
        %787 = vadd.xlane.f32.xlu0 %v779
        %v788 = vpop.xlane.xlu0 %787
        %789 = vadd.xlane.f32.xlu0 %v780
        %v790 = vpop.xlane.xlu0 %789
        %791 = vadd.xlane.f32.xlu0 %v781
        %v792 = vpop.xlane.xlu0 %791
        %793 = vadd.xlane.f32.xlu0 %v782
        %v794 = vpop.xlane.xlu0 %793
        %795 = vadd.xlane.f32.xlu0 %v783
        %v796 = vpop.xlane.xlu0 %795
        %797 = vadd.xlane.f32.xlu0 %v784
        %v798 = vpop.xlane.xlu0 %797
        %799 = vadd.xlane.f32.xlu0 %v785
        %v800 = vpop.xlane.xlu0 %799
        %801 = vadd.xlane.f32.xlu0 %v786
        %v802 = vpop.xlane.xlu0 %801
        %v803 = vmul.f32 %v788, 0.0625
        %v804 = vmul.f32 %v790, 0.0625
        %v805 = vmul.f32 %v792, 0.0625
        %v806 = vmul.f32 %v794, 0.0625
        %v807 = vmul.f32 %v796, 0.0625
        %v808 = vmul.f32 %v798, 0.0625
        %v809 = vmul.f32 %v800, 0.0625
        %v810 = vmul.f32 %v802, 0.0625
        %v811 = vadd.f32 %v803, 1e-05
        %v812 = vadd.f32 %v804, 1e-05
        %v813 = vadd.f32 %v805, 1e-05
        %v814 = vadd.f32 %v806, 1e-05
        %v815 = vadd.f32 %v807, 1e-05
        %v816 = vadd.f32 %v808, 1e-05
        %v817 = vadd.f32 %v809, 1e-05
        %v818 = vadd.f32 %v810, 1e-05
        %v819 = vrsqrt.pop %v811
        %v820 = vrsqrt.pop %v812
        %v821 = vrsqrt.pop %v813
        %v822 = vrsqrt.pop %v814
        %v823 = vrsqrt.pop %v815
        %v824 = vrsqrt.pop %v816
        %v825 = vrsqrt.pop %v817
        %v826 = vrsqrt.pop %v818
        %v827 = vmul.f32 %v771, %v819
        %v828 = vmul.f32 %v772, %v820
        %v829 = vmul.f32 %v773, %v821
        %v830 = vmul.f32 %v774, %v822
        %v831 = vmul.f32 %v775, %v823
        %v832 = vmul.f32 %v776, %v824
        %v833 = vmul.f32 %v777, %v825
        %v834 = vmul.f32 %v778, %v826
        %v835 = vlaneseq
        %v836 = vshrl.u32 %v835, 7
        %v837 = vsub.s32 0, %v836
        %v838 = vrot.slane %v730, %v837
        %v839 = vmul.f32 %v827, %v838
        %v840 = vmul.f32 %v828, %v838
        %v841 = vmul.f32 %v829, %v838
        %v842 = vmul.f32 %v830, %v838
        %v843 = vmul.f32 %v831, %v838
        %v844 = vmul.f32 %v832, %v838
        %v845 = vmul.f32 %v833, %v838
        %v846 = vmul.f32 %v834, %v838
        %v847 = vlaneseq
        %v848 = vshrl.u32 %v847, 7
        %v849 = vsub.s32 1, %v848
        %v850 = vrot.slane %v730, %v849
        %v851 = vadd.f32 %v839, %v850
        %v852 = vadd.f32 %v840, %v850
        %v853 = vadd.f32 %v841, %v850
        %v854 = vadd.f32 %v842, %v850
        %v855 = vadd.f32 %v843, %v850
        %v856 = vadd.f32 %v844, %v850
        %v857 = vadd.f32 %v845, %v850
        %v858 = vadd.f32 %v846, %v850
        %v859 = vmax.f32 %v851, 0.0
        %v860 = vmax.f32 %v852, 0.0
        %v861 = vmax.f32 %v853, 0.0
        %v862 = vmax.f32 %v854, 0.0
        %v863 = vmax.f32 %v855, 0.0
        %v864 = vmax.f32 %v856, 0.0
        %v865 = vmax.f32 %v857, 0.0
        %v866 = vmax.f32 %v858, 0.0
        %v867 = vpack.c.bf16 %v860, %v859
        %v868 = vpack.c.bf16 %v862, %v861
        %v869 = vpack.c.bf16 %v864, %v863
        %v870 = vpack.c.bf16 %v866, %v865
        %v871 = vld [vmem:[#allocation9] sm:$0xf]
        %v872 = vld [vmem:[#allocation9 + $0x4] sm:$0xf]
        %v873 = vld [vmem:[#allocation9 + $0x8] sm:$0xf]
        %v874 = vld [vmem:[#allocation9 + $0xc] sm:$0xf]
        %v875 = vld [vmem:[#allocation9 + $0x10] sm:$0xf]
        %v876 = vld [vmem:[#allocation9 + $0x14] sm:$0xf]
        %v877 = vld [vmem:[#allocation9 + $0x18] sm:$0xf]
        %v878 = vld [vmem:[#allocation9 + $0x1c] sm:$0xf]
        %v887 = vunpack.c.l.b16 %v871
        %v888 = vunpack.c.l.b16 %v872
        %v889 = vunpack.c.l.b16 %v873
        %v890 = vunpack.c.l.b16 %v874
        %v891 = vunpack.c.l.b16 %v875
        %v892 = vunpack.c.l.b16 %v876
        %v893 = vunpack.c.l.b16 %v877
        %v894 = vunpack.c.l.b16 %v878
        %v895 = vpack.c.b16 %v888, %v887
        %v896 = vpack.c.b16 %v890, %v889
        %v897 = vpack.c.b16 %v892, %v891
        %v898 = vpack.c.b16 %v894, %v893
        %vm899 = vcmask 523264
        %v901 = vsel %vm899, %v895, 0
        %v904 = vsel %vm899, %v896, 0
        %v907 = vsel %vm899, %v897, 0
        %v910 = vsel %vm899, %v898, 0
        %912 = vmatprep.subr.bf16.mxu0 0
        %913 = vmatpush1.bf16.msra.mxu0 %v867
        %914 = vmatprep.subr.bf16.mxu0 0
        %915 = vmatpush1.bf16.msra.mxu0 %v868
        %916 = vmatprep.subr.bf16.mxu0 0
        %917 = vmatpush1.bf16.msra.mxu0 %v869
        %918 = vmatprep.subr.bf16.mxu0 0
        %919 = vmatpush1.bf16.msra.mxu0 %v870
        %920 = vmatprep.subr.bf16.mxu0 0
        %921 = vmatpush1.bf16.msra.mxu0 0
        %922 = vmatprep.subr.bf16.mxu0 0
        %923 = vmatpush1.bf16.msra.mxu0 0
        %924 = vmatprep.subr.bf16.mxu0 0
        %925 = vmatpush1.bf16.msra.mxu0 0
        %926 = vmatprep.subr.bf16.mxu0 0
        %927 = vmatpush1.bf16.msra.mxu0 0
        %928 = vmatprep.subr.bf16.mxu0 0
        %929 = vmatpush1.bf16.msra.mxu0 0
        %930 = vmatprep.subr.bf16.mxu0 0
        %931 = vmatpush1.bf16.msra.mxu0 0
        %932 = vmatprep.subr.bf16.mxu0 0
        %933 = vmatpush1.bf16.msra.mxu0 0
        %934 = vmatprep.subr.bf16.mxu0 0
        %935 = vmatpush1.bf16.msra.mxu0 0
        %936 = vmatprep.subr.bf16.mxu0 0
        %937 = vmatpush1.bf16.msra.mxu0 0
        %938 = vmatprep.subr.bf16.mxu0 0
        %939 = vmatpush1.bf16.msra.mxu0 0
        %940 = vmatprep.subr.bf16.mxu0 0
        %941 = vmatpush1.bf16.msra.mxu0 0
        %942 = vmatprep.subr.bf16.mxu0 0
        %943 = vmatpush1.bf16.msra.mxu0 0
        %944 = vmatprep.mubr.bf16.mxu0 0
        %945 = vmatmul.mubr.bf16.gmra.mrb[0].mxu0 %v901
        %v946 = vpop.f32.mrb[0].mxu0
        %v947 = vadd.f32 0.0, %v946
        %v948 = vpop.f32.mrb[0].mxu0
        %v949 = vpop.f32.mrb[0].mxu0
        %v950 = vadd.f32 0.0, %v949
        %v951 = vpop.f32.mrb[0].mxu0
        %952 = vmatprep.mubr.bf16.mxu0 0
        %953 = vmatmul.mubr.bf16.gmra.mrb[0].mxu0 %v904
        %v954 = vpop.f32.mrb[0].mxu0
        %v955 = vadd.f32 0.0, %v954
        %v956 = vpop.f32.mrb[0].mxu0
        %v957 = vpop.f32.mrb[0].mxu0
        %v958 = vadd.f32 0.0, %v957
        %v959 = vpop.f32.mrb[0].mxu0
        %960 = vmatprep.mubr.bf16.mxu0 0
        %961 = vmatmul.mubr.bf16.gmra.mrb[0].mxu0 %v907
        %v962 = vpop.f32.mrb[0].mxu0
        %v963 = vadd.f32 0.0, %v962
        %v964 = vpop.f32.mrb[0].mxu0
        %v965 = vpop.f32.mrb[0].mxu0
        %v966 = vadd.f32 0.0, %v965
        %v967 = vpop.f32.mrb[0].mxu0
        %968 = vmatprep.mubr.bf16.mxu0 0
        %969 = vmatmul.mubr.bf16.gmra.mrb[0].mxu0 %v910
        %v970 = vpop.f32.mrb[0].mxu0
        %v971 = vadd.f32 0.0, %v970
        %v972 = vpop.f32.mrb[0].mxu0
        %v973 = vpop.f32.mrb[0].mxu0
        %v974 = vadd.f32 0.0, %v973
        %v975 = vpop.f32.mrb[0].mxu0
        %976 = vdwg.mxu0
        %v977 = vpack.c.bf16 %v950, %v947
        %v978 = vpack.c.bf16 %v958, %v955
        %v979 = vpack.c.bf16 %v966, %v963
        %v980 = vpack.c.bf16 %v974, %v971
        %v981 = vld [vmem:[%s417] sm:$0xf]
        %v982 = vld [vmem:[%s417 + $0x4] sm:$0xf]
        %v983 = vld [vmem:[%s417 + $0x8] sm:$0xf]
        %v984 = vld [vmem:[%s417 + $0xc] sm:$0xf]
        %v985 = vld [vmem:[%s417 + $0x10] sm:$0xf]
        %v986 = vld [vmem:[%s417 + $0x14] sm:$0xf]
        %v987 = vld [vmem:[%s417 + $0x18] sm:$0xf]
        %v988 = vld [vmem:[%s417 + $0x1c] sm:$0xf]
        %v989 = vld [vmem:[%s417 + $0x20] sm:$0xf]
        %v990 = vld [vmem:[%s417 + $0x24] sm:$0xf]
        %v991 = vld [vmem:[%s417 + $0x28] sm:$0xf]
        %v992 = vld [vmem:[%s417 + $0x2c] sm:$0xf]
        %v993 = vld [vmem:[%s417 + $0x30] sm:$0xf]
        %v994 = vld [vmem:[%s417 + $0x34] sm:$0xf]
        %v995 = vld [vmem:[%s417 + $0x38] sm:$0xf]
        %v996 = vld [vmem:[%s417 + $0x3c] sm:$0xf]
        %v997 = vld [vmem:[%s417 + $0x40] sm:$0xf]
        %v998 = vld [vmem:[%s417 + $0x44] sm:$0xf]
        %v999 = vld [vmem:[%s417 + $0x48] sm:$0xf]
        %v1000 = vld [vmem:[%s417 + $0x4c] sm:$0xf]
        %v1001 = vld [vmem:[%s417 + $0x50] sm:$0xf]
        %v1002 = vld [vmem:[%s417 + $0x54] sm:$0xf]
        %v1003 = vld [vmem:[%s417 + $0x58] sm:$0xf]
        %v1004 = vld [vmem:[%s417 + $0x5c] sm:$0xf]
        %v1005 = vld [vmem:[%s417 + $0x60] sm:$0xf]
        %v1006 = vld [vmem:[%s417 + $0x64] sm:$0xf]
        %v1007 = vld [vmem:[%s417 + $0x68] sm:$0xf]
        %v1008 = vld [vmem:[%s417 + $0x6c] sm:$0xf]
        %v1009 = vld [vmem:[%s417 + $0x70] sm:$0xf]
        %v1010 = vld [vmem:[%s417 + $0x74] sm:$0xf]
        %v1011 = vld [vmem:[%s417 + $0x78] sm:$0xf]
        %v1012 = vld [vmem:[%s417 + $0x7c] sm:$0xf]
        %v1013 = vlaneseq
        %v1014 = vshrl.u32 %v1013, 7
        %v1015 = vsub.s32 2, %v1014
        %v1016 = vrot.slane %v730, %v1015
        %v1049 = vunpack.c.l.b16 %v981
        %v1050 = vunpack.c.l.b16 %v982
        %v1051 = vunpack.c.l.b16 %v983
        %v1052 = vunpack.c.l.b16 %v984
        %v1053 = vunpack.c.l.b16 %v985
        %v1054 = vunpack.c.l.b16 %v986
        %v1055 = vunpack.c.l.b16 %v987
        %v1056 = vunpack.c.l.b16 %v988
        %v1057 = vunpack.c.l.b16 %v989
        %v1058 = vunpack.c.l.b16 %v990
        %v1059 = vunpack.c.l.b16 %v991
        %v1060 = vunpack.c.l.b16 %v992
        %v1061 = vunpack.c.l.b16 %v993
        %v1062 = vunpack.c.l.b16 %v994
        %v1063 = vunpack.c.l.b16 %v995
        %v1064 = vunpack.c.l.b16 %v996
        %v1065 = vunpack.c.l.b16 %v997
        %v1066 = vunpack.c.l.b16 %v998
        %v1067 = vunpack.c.l.b16 %v999
        %v1068 = vunpack.c.l.b16 %v1000
        %v1069 = vunpack.c.l.b16 %v1001
        %v1070 = vunpack.c.l.b16 %v1002
        %v1071 = vunpack.c.l.b16 %v1003
        %v1072 = vunpack.c.l.b16 %v1004
        %v1073 = vunpack.c.l.b16 %v1005
        %v1074 = vunpack.c.l.b16 %v1006
        %v1075 = vunpack.c.l.b16 %v1007
        %v1076 = vunpack.c.l.b16 %v1008
        %v1077 = vunpack.c.l.b16 %v1009
        %v1078 = vunpack.c.l.b16 %v1010
        %v1079 = vunpack.c.l.b16 %v1011
        %v1080 = vunpack.c.l.b16 %v1012
        %v1081 = vpack.c.b16 %v1050, %v1049
        %v1082 = vpack.c.b16 %v1052, %v1051
        %v1083 = vpack.c.b16 %v1054, %v1053
        %v1084 = vpack.c.b16 %v1056, %v1055
        %v1085 = vpack.c.b16 %v1058, %v1057
        %v1086 = vpack.c.b16 %v1060, %v1059
        %v1087 = vpack.c.b16 %v1062, %v1061
        %v1088 = vpack.c.b16 %v1064, %v1063
        %v1089 = vpack.c.b16 %v1066, %v1065
        %v1090 = vpack.c.b16 %v1068, %v1067
        %v1091 = vpack.c.b16 %v1070, %v1069
        %v1092 = vpack.c.b16 %v1072, %v1071
        %v1093 = vpack.c.b16 %v1074, %v1073
        %v1094 = vpack.c.b16 %v1076, %v1075
        %v1095 = vpack.c.b16 %v1078, %v1077
        %v1096 = vpack.c.b16 %v1080, %v1079
        %1113 = vmatprep.subr.bf16.mxu0 0
        %1114 = vmatpush1.bf16.msra.mxu0 %v1081
        %1115 = vmatprep.subr.bf16.mxu0 0
        %1116 = vmatpush1.bf16.msra.mxu0 %v1082
        %1117 = vmatprep.subr.bf16.mxu0 0
        %1118 = vmatpush1.bf16.msra.mxu0 %v1083
        %1119 = vmatprep.subr.bf16.mxu0 0
        %1120 = vmatpush1.bf16.msra.mxu0 %v1084
        %1121 = vmatprep.subr.bf16.mxu0 0
        %1122 = vmatpush1.bf16.msra.mxu0 %v1085
        %1123 = vmatprep.subr.bf16.mxu0 0
        %1124 = vmatpush1.bf16.msra.mxu0 %v1086
        %1125 = vmatprep.subr.bf16.mxu0 0
        %1126 = vmatpush1.bf16.msra.mxu0 %v1087
        %1127 = vmatprep.subr.bf16.mxu0 0
        %1128 = vmatpush1.bf16.msra.mxu0 %v1088
        %1129 = vmatprep.subr.bf16.mxu0 0
        %1130 = vmatpush1.bf16.msra.mxu0 %v1089
        %1131 = vmatprep.subr.bf16.mxu0 0
        %1132 = vmatpush1.bf16.msra.mxu0 %v1090
        %1133 = vmatprep.subr.bf16.mxu0 0
        %1134 = vmatpush1.bf16.msra.mxu0 %v1091
        %1135 = vmatprep.subr.bf16.mxu0 0
        %1136 = vmatpush1.bf16.msra.mxu0 %v1092
        %1137 = vmatprep.subr.bf16.mxu0 0
        %1138 = vmatpush1.bf16.msra.mxu0 %v1093
        %1139 = vmatprep.subr.bf16.mxu0 0
        %1140 = vmatpush1.bf16.msra.mxu0 %v1094
        %1141 = vmatprep.subr.bf16.mxu0 0
        %1142 = vmatpush1.bf16.msra.mxu0 %v1095
        %1143 = vmatprep.subr.bf16.mxu0 0
        %1144 = vmatpush1.bf16.msra.mxu0 %v1096
        %1145 = vmatprep.mubr.bf16.mxu0 %v867
        %1146 = vmatmul.mubr.bf16.gmra.mrb[0].mxu0 %v977
        %v1147 = vpop.f32.mrb[0].mxu0
        %v1148 = vadd.f32 %v1016, %v1147
        %v1149 = vpop.f32.mrb[0].mxu0
        %v1150 = vpop.f32.mrb[0].mxu0
        %v1151 = vadd.f32 %v1016, %v1150
        %v1152 = vpop.f32.mrb[0].mxu0
        %1153 = vmatprep.mubr.bf16.mxu0 %v868
        %1154 = vmatmul.mubr.bf16.gmra.mrb[0].mxu0 %v978
        %v1155 = vpop.f32.mrb[0].mxu0
        %v1156 = vadd.f32 %v1016, %v1155
        %v1157 = vpop.f32.mrb[0].mxu0
        %v1158 = vpop.f32.mrb[0].mxu0
        %v1159 = vadd.f32 %v1016, %v1158
        %v1160 = vpop.f32.mrb[0].mxu0
        %1161 = vmatprep.mubr.bf16.mxu0 %v869
        %1162 = vmatmul.mubr.bf16.gmra.mrb[0].mxu0 %v979
        %v1163 = vpop.f32.mrb[0].mxu0
        %v1164 = vadd.f32 %v1016, %v1163
        %v1165 = vpop.f32.mrb[0].mxu0
        %v1166 = vpop.f32.mrb[0].mxu0
        %v1167 = vadd.f32 %v1016, %v1166
        %v1168 = vpop.f32.mrb[0].mxu0
        %1169 = vmatprep.mubr.bf16.mxu0 %v870
        %1170 = vmatmul.mubr.bf16.gmra.mrb[0].mxu0 %v980
        %v1171 = vpop.f32.mrb[0].mxu0
        %v1172 = vadd.f32 %v1016, %v1171
        %v1173 = vpop.f32.mrb[0].mxu0
        %v1174 = vpop.f32.mrb[0].mxu0
        %v1175 = vadd.f32 %v1016, %v1174
        %v1176 = vpop.f32.mrb[0].mxu0
        %1177 = vdwg.mxu0
        %s1178 = smul.u32 %s32, 64
        %s1179 = scalar_lea.vmem [#allocation2], %s1178
        %v1180 = vld [vmem:[%s1179] sm:$0xff]
        %v1181 = vld [vmem:[%s1179 + $0x8] sm:$0xff]
        %v1182 = vld [vmem:[%s1179 + $0x10] sm:$0xff]
        %v1183 = vld [vmem:[%s1179 + $0x18] sm:$0xff]
        %v1184 = vld [vmem:[%s1179 + $0x20] sm:$0xff]
        %v1185 = vld [vmem:[%s1179 + $0x28] sm:$0xff]
        %v1186 = vld [vmem:[%s1179 + $0x30] sm:$0xff]
        %v1187 = vld [vmem:[%s1179 + $0x38] sm:$0xff]
        %v1188 = vadd.f32 %v1180, %v1148
        %v1189 = vadd.f32 %v1181, %v1151
        %v1190 = vadd.f32 %v1182, %v1156
        %v1191 = vadd.f32 %v1183, %v1159
        %v1192 = vadd.f32 %v1184, %v1164
        %v1193 = vadd.f32 %v1185, %v1167
        %v1194 = vadd.f32 %v1186, %v1172
        %v1195 = vadd.f32 %v1187, %v1175
        %1196 = vst [vmem:[%s1179] sm:$0xff] %v1188
        %1197 = vst [vmem:[%s1179 + $0x8] sm:$0xff] %v1189
        %1198 = vst [vmem:[%s1179 + $0x10] sm:$0xff] %v1190
        %1199 = vst [vmem:[%s1179 + $0x18] sm:$0xff] %v1191
        %1200 = vst [vmem:[%s1179 + $0x20] sm:$0xff] %v1192
        %1201 = vst [vmem:[%s1179 + $0x28] sm:$0xff] %v1193
        %1202 = vst [vmem:[%s1179 + $0x30] sm:$0xff] %v1194
        %1203 = vst [vmem:[%s1179 + $0x38] sm:$0xff] %v1195
        %1204 = vst [vmem:[#allocation3] sm:$0xff] %v1188
        %1205 = vst [vmem:[#allocation3 + $0x8] sm:$0xff] %v1189
        %1206 = vst [vmem:[#allocation3 + $0x10] sm:$0xff] %v1190
        %1207 = vst [vmem:[#allocation3 + $0x18] sm:$0xff] %v1191
        %1208 = vst [vmem:[#allocation3 + $0x20] sm:$0xff] %v1192
        %1209 = vst [vmem:[#allocation3 + $0x28] sm:$0xff] %v1193
        %1210 = vst [vmem:[#allocation3 + $0x30] sm:$0xff] %v1194
        %1211 = vst [vmem:[#allocation3 + $0x38] sm:$0xff] %v1195
        %p1212 = scmp.eq.s32.totalorder %s31, 1
        %p1213 = scmp.eq.s32.totalorder %s32, 1
        %p1214 = pnand %p1212, %p1213
        %p1215 = pneg %p1214
        // Predicated region
        $region89: #{tpu_custom_call.1} parent=55 // pred_check
          _
        $region90: #{tpu_custom_call.1} parent=55 // pred_check_branch
          %1217 = sbr.rel (%p1214) target = $region92
        $region91: #{tpu_custom_call.1} parent=55 // pred_region
          %v1218 = vld [vmem:[%s6] sm:$0x3]
          %v1219 = vld [vmem:[%s6 + $0x2] sm:$0x3]
          %v1220 = vld [vmem:[#allocation2] sm:$0xff]
          %v1221 = vld [vmem:[#allocation2 + $0x8] sm:$0xff]
          %v1222 = vld [vmem:[#allocation2 + $0x10] sm:$0xff]
          %v1223 = vld [vmem:[#allocation2 + $0x18] sm:$0xff]
          %v1224 = vld [vmem:[#allocation2 + $0x20] sm:$0xff]
          %v1225 = vld [vmem:[#allocation2 + $0x28] sm:$0xff]
          %v1226 = vld [vmem:[#allocation2 + $0x30] sm:$0xff]
          %v1227 = vld [vmem:[#allocation2 + $0x38] sm:$0xff]
          %1228 = vadd.xlane.f32.xlu0 %v1220
          %v1229 = vpop.xlane.xlu0 %1228
          %1230 = vadd.xlane.f32.xlu0 %v1221
          %v1231 = vpop.xlane.xlu0 %1230
          %1232 = vadd.xlane.f32.xlu0 %v1222
          %v1233 = vpop.xlane.xlu0 %1232
          %1234 = vadd.xlane.f32.xlu0 %v1223
          %v1235 = vpop.xlane.xlu0 %1234
          %1236 = vadd.xlane.f32.xlu0 %v1224
          %v1237 = vpop.xlane.xlu0 %1236
          %1238 = vadd.xlane.f32.xlu0 %v1225
          %v1239 = vpop.xlane.xlu0 %1238
          %1240 = vadd.xlane.f32.xlu0 %v1226
          %v1241 = vpop.xlane.xlu0 %1240
          %1242 = vadd.xlane.f32.xlu0 %v1227
          %v1243 = vpop.xlane.xlu0 %1242
          %v1244 = vadd.f32 %v1229, 0.0
          %v1245 = vadd.f32 %v1231, 0.0
          %v1246 = vadd.f32 %v1233, 0.0
          %v1247 = vadd.f32 %v1235, 0.0
          %v1248 = vadd.f32 %v1237, 0.0
          %v1249 = vadd.f32 %v1239, 0.0
          %v1250 = vadd.f32 %v1241, 0.0
          %v1251 = vadd.f32 %v1243, 0.0
          %s1252 = scalar_lea.vmem [#allocation2], 64
          %v1253 = vld [vmem:[%s1252] sm:$0xff]
          %v1254 = vld [vmem:[%s1252 + $0x8] sm:$0xff]
          %v1255 = vld [vmem:[%s1252 + $0x10] sm:$0xff]
          %v1256 = vld [vmem:[%s1252 + $0x18] sm:$0xff]
          %v1257 = vld [vmem:[%s1252 + $0x20] sm:$0xff]
          %v1258 = vld [vmem:[%s1252 + $0x28] sm:$0xff]
          %v1259 = vld [vmem:[%s1252 + $0x30] sm:$0xff]
          %v1260 = vld [vmem:[%s1252 + $0x38] sm:$0xff]
          %1261 = vadd.xlane.f32.xlu0 %v1253
          %v1262 = vpop.xlane.xlu0 %1261
          %1263 = vadd.xlane.f32.xlu0 %v1254
          %v1264 = vpop.xlane.xlu0 %1263
          %1265 = vadd.xlane.f32.xlu0 %v1255
          %v1266 = vpop.xlane.xlu0 %1265
          %1267 = vadd.xlane.f32.xlu0 %v1256
          %v1268 = vpop.xlane.xlu0 %1267
          %1269 = vadd.xlane.f32.xlu0 %v1257
          %v1270 = vpop.xlane.xlu0 %1269
          %1271 = vadd.xlane.f32.xlu0 %v1258
          %v1272 = vpop.xlane.xlu0 %1271
          %1273 = vadd.xlane.f32.xlu0 %v1259
          %v1274 = vpop.xlane.xlu0 %1273
          %1275 = vadd.xlane.f32.xlu0 %v1260
          %v1276 = vpop.xlane.xlu0 %1275
          %v1277 = vadd.f32 %v1244, %v1262
          %v1278 = vadd.f32 %v1245, %v1264
          %v1279 = vadd.f32 %v1246, %v1266
          %v1280 = vadd.f32 %v1247, %v1268
          %v1281 = vadd.f32 %v1248, %v1270
          %v1282 = vadd.f32 %v1249, %v1272
          %v1283 = vadd.f32 %v1250, %v1274
          %v1284 = vadd.f32 %v1251, %v1276
          %v1285 = vmul.f32 %v1277, 0.03125
          %v1286 = vmul.f32 %v1278, 0.03125
          %v1287 = vmul.f32 %v1279, 0.03125
          %v1288 = vmul.f32 %v1280, 0.03125
          %v1289 = vmul.f32 %v1281, 0.03125
          %v1290 = vmul.f32 %v1282, 0.03125
          %v1291 = vmul.f32 %v1283, 0.03125
          %v1292 = vmul.f32 %v1284, 0.03125
          %v1293 = vsub.f32 %v1220, %v1285
          %v1294 = vsub.f32 %v1221, %v1286
          %v1295 = vsub.f32 %v1222, %v1287
          %v1296 = vsub.f32 %v1223, %v1288
          %v1297 = vsub.f32 %v1224, %v1289
          %v1298 = vsub.f32 %v1225, %v1290
          %v1299 = vsub.f32 %v1226, %v1291
          %v1300 = vsub.f32 %v1227, %v1292
          %v1301 = vmul.f32 %v1293, %v465
          %v1302 = vmul.f32 %v1294, %v465
          %v1303 = vmul.f32 %v1295, %v465
          %v1304 = vmul.f32 %v1296, %v465
          %v1305 = vmul.f32 %v1297, %v465
          %v1306 = vmul.f32 %v1298, %v465
          %v1307 = vmul.f32 %v1299, %v465
          %v1308 = vmul.f32 %v1300, %v465
          %v1309 = vmul.f32 %v1301, %v1301
          %v1310 = vmul.f32 %v1302, %v1302
          %v1311 = vmul.f32 %v1303, %v1303
          %v1312 = vmul.f32 %v1304, %v1304
          %v1313 = vmul.f32 %v1305, %v1305
          %v1314 = vmul.f32 %v1306, %v1306
          %v1315 = vmul.f32 %v1307, %v1307
          %v1316 = vmul.f32 %v1308, %v1308
          %1317 = vadd.xlane.f32.xlu0 %v1309
          %v1318 = vpop.xlane.xlu0 %1317
          %1319 = vadd.xlane.f32.xlu0 %v1310
          %v1320 = vpop.xlane.xlu0 %1319
          %1321 = vadd.xlane.f32.xlu0 %v1311
          %v1322 = vpop.xlane.xlu0 %1321
          %1323 = vadd.xlane.f32.xlu0 %v1312
          %v1324 = vpop.xlane.xlu0 %1323
          %1325 = vadd.xlane.f32.xlu0 %v1313
          %v1326 = vpop.xlane.xlu0 %1325
          %1327 = vadd.xlane.f32.xlu0 %v1314
          %v1328 = vpop.xlane.xlu0 %1327
          %1329 = vadd.xlane.f32.xlu0 %v1315
          %v1330 = vpop.xlane.xlu0 %1329
          %1331 = vadd.xlane.f32.xlu0 %v1316
          %v1332 = vpop.xlane.xlu0 %1331
          %v1333 = vadd.f32 %v1318, 0.0
          %v1334 = vadd.f32 %v1320, 0.0
          %v1335 = vadd.f32 %v1322, 0.0
          %v1336 = vadd.f32 %v1324, 0.0
          %v1337 = vadd.f32 %v1326, 0.0
          %v1338 = vadd.f32 %v1328, 0.0
          %v1339 = vadd.f32 %v1330, 0.0
          %v1340 = vadd.f32 %v1332, 0.0
          %v1341 = vsub.f32 %v1253, %v1285
          %v1342 = vsub.f32 %v1254, %v1286
          %v1343 = vsub.f32 %v1255, %v1287
          %v1344 = vsub.f32 %v1256, %v1288
          %v1345 = vsub.f32 %v1257, %v1289
          %v1346 = vsub.f32 %v1258, %v1290
          %v1347 = vsub.f32 %v1259, %v1291
          %v1348 = vsub.f32 %v1260, %v1292
          %v1349 = vmul.f32 %v1341, %v465
          %v1350 = vmul.f32 %v1342, %v465
          %v1351 = vmul.f32 %v1343, %v465
          %v1352 = vmul.f32 %v1344, %v465
          %v1353 = vmul.f32 %v1345, %v465
          %v1354 = vmul.f32 %v1346, %v465
          %v1355 = vmul.f32 %v1347, %v465
          %v1356 = vmul.f32 %v1348, %v465
          %v1357 = vmul.f32 %v1349, %v1349
          %v1358 = vmul.f32 %v1350, %v1350
          %v1359 = vmul.f32 %v1351, %v1351
          %v1360 = vmul.f32 %v1352, %v1352
          %v1361 = vmul.f32 %v1353, %v1353
          %v1362 = vmul.f32 %v1354, %v1354
          %v1363 = vmul.f32 %v1355, %v1355
          %v1364 = vmul.f32 %v1356, %v1356
          %1365 = vadd.xlane.f32.xlu0 %v1357
          %v1366 = vpop.xlane.xlu0 %1365
          %1367 = vadd.xlane.f32.xlu0 %v1358
          %v1368 = vpop.xlane.xlu0 %1367
          %1369 = vadd.xlane.f32.xlu0 %v1359
          %v1370 = vpop.xlane.xlu0 %1369
          %1371 = vadd.xlane.f32.xlu0 %v1360
          %v1372 = vpop.xlane.xlu0 %1371
          %1373 = vadd.xlane.f32.xlu0 %v1361
          %v1374 = vpop.xlane.xlu0 %1373
          %1375 = vadd.xlane.f32.xlu0 %v1362
          %v1376 = vpop.xlane.xlu0 %1375
          %1377 = vadd.xlane.f32.xlu0 %v1363
          %v1378 = vpop.xlane.xlu0 %1377
          %1379 = vadd.xlane.f32.xlu0 %v1364
          %v1380 = vpop.xlane.xlu0 %1379
          %v1381 = vadd.f32 %v1333, %v1366
          %v1382 = vadd.f32 %v1334, %v1368
          %v1383 = vadd.f32 %v1335, %v1370
          %v1384 = vadd.f32 %v1336, %v1372
          %v1385 = vadd.f32 %v1337, %v1374
          %v1386 = vadd.f32 %v1338, %v1376
          %v1387 = vadd.f32 %v1339, %v1378
          %v1388 = vadd.f32 %v1340, %v1380
          %v1389 = vmul.f32 %v1381, 0.03125
          %v1390 = vmul.f32 %v1382, 0.03125
          %v1391 = vmul.f32 %v1383, 0.03125
          %v1392 = vmul.f32 %v1384, 0.03125
          %v1393 = vmul.f32 %v1385, 0.03125
          %v1394 = vmul.f32 %v1386, 0.03125
          %v1395 = vmul.f32 %v1387, 0.03125
          %v1396 = vmul.f32 %v1388, 0.03125
          %v1397 = vadd.f32 %v1389, 1e-05
          %v1398 = vadd.f32 %v1390, 1e-05
          %v1399 = vadd.f32 %v1391, 1e-05
          %v1400 = vadd.f32 %v1392, 1e-05
          %v1401 = vadd.f32 %v1393, 1e-05
          %v1402 = vadd.f32 %v1394, 1e-05
          %v1403 = vadd.f32 %v1395, 1e-05
          %v1404 = vadd.f32 %v1396, 1e-05
          %v1405 = vrsqrt.pop %v1397
          %v1406 = vrsqrt.pop %v1398
          %v1407 = vrsqrt.pop %v1399
          %v1408 = vrsqrt.pop %v1400
          %v1409 = vrsqrt.pop %v1401
          %v1410 = vrsqrt.pop %v1402
          %v1411 = vrsqrt.pop %v1403
          %v1412 = vrsqrt.pop %v1404
          %v1413 = vmul.f32 %v1301, %v1405
          %v1414 = vmul.f32 %v1302, %v1406
          %v1415 = vmul.f32 %v1303, %v1407
          %v1416 = vmul.f32 %v1304, %v1408
          %v1417 = vmul.f32 %v1305, %v1409
          %v1418 = vmul.f32 %v1306, %v1410
          %v1419 = vmul.f32 %v1307, %v1411
          %v1420 = vmul.f32 %v1308, %v1412
          %v1421 = vlaneseq
          %v1422 = vshrl.u32 %v1421, 7
          %v1423 = vsub.s32 0, %v1422
          %v1424 = vrot.slane %v1218, %v1423
          %v1425 = vmul.f32 %v1413, %v1424
          %v1426 = vmul.f32 %v1414, %v1424
          %v1427 = vmul.f32 %v1415, %v1424
          %v1428 = vmul.f32 %v1416, %v1424
          %v1429 = vmul.f32 %v1417, %v1424
          %v1430 = vmul.f32 %v1418, %v1424
          %v1431 = vmul.f32 %v1419, %v1424
          %v1432 = vmul.f32 %v1420, %v1424
          %v1433 = vlaneseq
          %v1434 = vshrl.u32 %v1433, 7
          %v1435 = vsub.s32 1, %v1434
          %v1436 = vrot.slane %v1218, %v1435
          %v1437 = vadd.f32 %v1425, %v1436
          %v1438 = vadd.f32 %v1426, %v1436
          %v1439 = vadd.f32 %v1427, %v1436
          %v1440 = vadd.f32 %v1428, %v1436
          %v1441 = vadd.f32 %v1429, %v1436
          %v1442 = vadd.f32 %v1430, %v1436
          %v1443 = vadd.f32 %v1431, %v1436
          %v1444 = vadd.f32 %v1432, %v1436
          %v1445 = vmax.f32 %v1437, 0.0
          %v1446 = vmax.f32 %v1438, 0.0
          %v1447 = vmax.f32 %v1439, 0.0
          %v1448 = vmax.f32 %v1440, 0.0
          %v1449 = vmax.f32 %v1441, 0.0
          %v1450 = vmax.f32 %v1442, 0.0
          %v1451 = vmax.f32 %v1443, 0.0
          %v1452 = vmax.f32 %v1444, 0.0
          %v1453 = vpack.c.bf16 %v1446, %v1445
          %v1454 = vpack.c.bf16 %v1448, %v1447
          %v1455 = vpack.c.bf16 %v1450, %v1449
          %v1456 = vpack.c.bf16 %v1452, %v1451
          %v1457 = vmul.f32 %v1349, %v1405
          %v1458 = vmul.f32 %v1350, %v1406
          %v1459 = vmul.f32 %v1351, %v1407
          %v1460 = vmul.f32 %v1352, %v1408
          %v1461 = vmul.f32 %v1353, %v1409
          %v1462 = vmul.f32 %v1354, %v1410
          %v1463 = vmul.f32 %v1355, %v1411
          %v1464 = vmul.f32 %v1356, %v1412
          %v1465 = vlaneseq
          %v1466 = vshrl.u32 %v1465, 7
          %v1467 = vsub.s32 0, %v1466
          %v1468 = vrot.slane %v1219, %v1467
          %v1469 = vmul.f32 %v1457, %v1468
          %v1470 = vmul.f32 %v1458, %v1468
          %v1471 = vmul.f32 %v1459, %v1468
          %v1472 = vmul.f32 %v1460, %v1468
          %v1473 = vmul.f32 %v1461, %v1468
          %v1474 = vmul.f32 %v1462, %v1468
          %v1475 = vmul.f32 %v1463, %v1468
          %v1476 = vmul.f32 %v1464, %v1468
          %v1477 = vlaneseq
          %v1478 = vshrl.u32 %v1477, 7
          %v1479 = vsub.s32 1, %v1478
          %v1480 = vrot.slane %v1219, %v1479
          %v1481 = vadd.f32 %v1469, %v1480
          %v1482 = vadd.f32 %v1470, %v1480
          %v1483 = vadd.f32 %v1471, %v1480
          %v1484 = vadd.f32 %v1472, %v1480
          %v1485 = vadd.f32 %v1473, %v1480
          %v1486 = vadd.f32 %v1474, %v1480
          %v1487 = vadd.f32 %v1475, %v1480
          %v1488 = vadd.f32 %v1476, %v1480
          %v1489 = vmax.f32 %v1481, 0.0
          %v1490 = vmax.f32 %v1482, 0.0
          %v1491 = vmax.f32 %v1483, 0.0
          %v1492 = vmax.f32 %v1484, 0.0
          %v1493 = vmax.f32 %v1485, 0.0
          %v1494 = vmax.f32 %v1486, 0.0
          %v1495 = vmax.f32 %v1487, 0.0
          %v1496 = vmax.f32 %v1488, 0.0
          %v1497 = vpack.c.bf16 %v1490, %v1489
          %v1498 = vpack.c.bf16 %v1492, %v1491
          %v1499 = vpack.c.bf16 %v1494, %v1493
          %v1500 = vpack.c.bf16 %v1496, %v1495
          %v1501 = vld [vmem:[#allocation13] sm:$0xf]
          %v1502 = vld [vmem:[#allocation13 + $0x4] sm:$0xf]
          %v1503 = vld [vmem:[#allocation13 + $0x8] sm:$0xf]
          %v1504 = vld [vmem:[#allocation13 + $0xc] sm:$0xf]
          %v1505 = vld [vmem:[#allocation13 + $0x10] sm:$0xf]
          %v1506 = vld [vmem:[#allocation13 + $0x14] sm:$0xf]
          %v1507 = vld [vmem:[#allocation13 + $0x18] sm:$0xf]
          %v1508 = vld [vmem:[#allocation13 + $0x1c] sm:$0xf]
          %v1509 = vld [vmem:[#allocation13 + $0x20] sm:$0xf]
          %v1510 = vld [vmem:[#allocation13 + $0x24] sm:$0xf]
          %v1511 = vld [vmem:[#allocation13 + $0x28] sm:$0xf]
          %v1512 = vld [vmem:[#allocation13 + $0x2c] sm:$0xf]
          %v1513 = vld [vmem:[#allocation13 + $0x30] sm:$0xf]
          %v1514 = vld [vmem:[#allocation13 + $0x34] sm:$0xf]
          %v1515 = vld [vmem:[#allocation13 + $0x38] sm:$0xf]
          %v1516 = vld [vmem:[#allocation13 + $0x3c] sm:$0xf]
          %v1517 = vld [vmem:[#allocation13 + $0x40] sm:$0xf]
          %v1518 = vld [vmem:[#allocation13 + $0x44] sm:$0xf]
          %v1519 = vld [vmem:[#allocation13 + $0x48] sm:$0xf]
          %v1520 = vld [vmem:[#allocation13 + $0x4c] sm:$0xf]
          %v1521 = vld [vmem:[#allocation13 + $0x50] sm:$0xf]
          %v1522 = vld [vmem:[#allocation13 + $0x54] sm:$0xf]
          %v1523 = vld [vmem:[#allocation13 + $0x58] sm:$0xf]
          %v1524 = vld [vmem:[#allocation13 + $0x5c] sm:$0xf]
          %v1525 = vld [vmem:[#allocation13 + $0x60] sm:$0xf]
          %v1526 = vld [vmem:[#allocation13 + $0x64] sm:$0xf]
          %v1527 = vld [vmem:[#allocation13 + $0x68] sm:$0xf]
          %v1528 = vld [vmem:[#allocation13 + $0x6c] sm:$0xf]
          %v1529 = vld [vmem:[#allocation13 + $0x70] sm:$0xf]
          %v1530 = vld [vmem:[#allocation13 + $0x74] sm:$0xf]
          %v1531 = vld [vmem:[#allocation13 + $0x78] sm:$0xf]
          %v1532 = vld [vmem:[#allocation13 + $0x7c] sm:$0xf]
          %v1533 = vld [vmem:[%s8] sm:$0x1]
          %v1535 = vlaneseq
          %v1536 = vshrl.u32 %v1535, 7
          %v1537 = vsub.s32 0, %v1536
          %v1538 = vrot.slane %v1533, %v1537
          %v1572 = vunpack.c.l.b16 %v1501
          %v1573 = vunpack.c.l.b16 %v1502
          %v1574 = vunpack.c.l.b16 %v1503
          %v1575 = vunpack.c.l.b16 %v1504
          %v1576 = vunpack.c.l.b16 %v1505
          %v1577 = vunpack.c.l.b16 %v1506
          %v1578 = vunpack.c.l.b16 %v1507
          %v1579 = vunpack.c.l.b16 %v1508
          %v1580 = vunpack.c.l.b16 %v1509
          %v1581 = vunpack.c.l.b16 %v1510
          %v1582 = vunpack.c.l.b16 %v1511
          %v1583 = vunpack.c.l.b16 %v1512
          %v1584 = vunpack.c.l.b16 %v1513
          %v1585 = vunpack.c.l.b16 %v1514
          %v1586 = vunpack.c.l.b16 %v1515
          %v1587 = vunpack.c.l.b16 %v1516
          %v1588 = vunpack.c.l.b16 %v1517
          %v1589 = vunpack.c.l.b16 %v1518
          %v1590 = vunpack.c.l.b16 %v1519
          %v1591 = vunpack.c.l.b16 %v1520
          %v1592 = vunpack.c.l.b16 %v1521
          %v1593 = vunpack.c.l.b16 %v1522
          %v1594 = vunpack.c.l.b16 %v1523
          %v1595 = vunpack.c.l.b16 %v1524
          %v1596 = vunpack.c.l.b16 %v1525
          %v1597 = vunpack.c.l.b16 %v1526
          %v1598 = vunpack.c.l.b16 %v1527
          %v1599 = vunpack.c.l.b16 %v1528
          %v1600 = vunpack.c.l.b16 %v1529
          %v1601 = vunpack.c.l.b16 %v1530
          %v1602 = vunpack.c.l.b16 %v1531
          %v1603 = vunpack.c.l.b16 %v1532
          %v1604 = vpack.c.b16 %v1573, %v1572
          %v1605 = vpack.c.b16 %v1575, %v1574
          %v1606 = vpack.c.b16 %v1577, %v1576
          %v1607 = vpack.c.b16 %v1579, %v1578
          %v1608 = vpack.c.b16 %v1581, %v1580
          %v1609 = vpack.c.b16 %v1583, %v1582
          %v1610 = vpack.c.b16 %v1585, %v1584
          %v1611 = vpack.c.b16 %v1587, %v1586
          %v1612 = vpack.c.b16 %v1589, %v1588
          %v1613 = vpack.c.b16 %v1591, %v1590
          %v1614 = vpack.c.b16 %v1593, %v1592
          %v1615 = vpack.c.b16 %v1595, %v1594
          %v1616 = vpack.c.b16 %v1597, %v1596
          %v1617 = vpack.c.b16 %v1599, %v1598
          %v1618 = vpack.c.b16 %v1601, %v1600
          %v1619 = vpack.c.b16 %v1603, %v1602
          %1636 = vmatprep.subr.bf16.mxu0 0
          %1637 = vmatpush1.bf16.msra.mxu0 %v1604
          %1638 = vmatprep.subr.bf16.mxu0 0
          %1639 = vmatpush1.bf16.msra.mxu0 %v1605
          %1640 = vmatprep.subr.bf16.mxu0 0
          %1641 = vmatpush1.bf16.msra.mxu0 %v1606
          %1642 = vmatprep.subr.bf16.mxu0 0
          %1643 = vmatpush1.bf16.msra.mxu0 %v1607
          %1644 = vmatprep.subr.bf16.mxu0 0
          %1645 = vmatpush1.bf16.msra.mxu0 %v1608
          %1646 = vmatprep.subr.bf16.mxu0 0
          %1647 = vmatpush1.bf16.msra.mxu0 %v1609
          %1648 = vmatprep.subr.bf16.mxu0 0
          %1649 = vmatpush1.bf16.msra.mxu0 %v1610
          %1650 = vmatprep.subr.bf16.mxu0 0
          %1651 = vmatpush1.bf16.msra.mxu0 %v1611
          %1652 = vmatprep.subr.bf16.mxu0 0
          %1653 = vmatpush1.bf16.msra.mxu0 %v1612
          %1654 = vmatprep.subr.bf16.mxu0 0
          %1655 = vmatpush1.bf16.msra.mxu0 %v1613
          %1656 = vmatprep.subr.bf16.mxu0 0
          %1657 = vmatpush1.bf16.msra.mxu0 %v1614
          %1658 = vmatprep.subr.bf16.mxu0 0
          %1659 = vmatpush1.bf16.msra.mxu0 %v1615
          %1660 = vmatprep.subr.bf16.mxu0 0
          %1661 = vmatpush1.bf16.msra.mxu0 %v1616
          %1662 = vmatprep.subr.bf16.mxu0 0
          %1663 = vmatpush1.bf16.msra.mxu0 %v1617
          %1664 = vmatprep.subr.bf16.mxu0 0
          %1665 = vmatpush1.bf16.msra.mxu0 %v1618
          %1666 = vmatprep.subr.bf16.mxu0 0
          %1667 = vmatpush1.bf16.msra.mxu0 %v1619
          %1668 = vmatprep.mubr.bf16.mxu0 %v1497
          %1669 = vmatmul.mubr.bf16.gmra.mrb[0].mxu0 %v1453
          %v1670 = vpop.f32.mrb[0].mxu0
          %v1671 = vadd.f32 %v1538, %v1670
          %v1672 = vpop.f32.mrb[0].mxu0
          %v1673 = vpop.f32.mrb[0].mxu0
          %v1674 = vadd.f32 %v1538, %v1673
          %v1675 = vpop.f32.mrb[0].mxu0
          %1676 = vmatprep.mubr.bf16.mxu0 %v1498
          %1677 = vmatmul.mubr.bf16.gmra.mrb[0].mxu0 %v1454
          %v1678 = vpop.f32.mrb[0].mxu0
          %v1679 = vadd.f32 %v1538, %v1678
          %v1680 = vpop.f32.mrb[0].mxu0
          %v1681 = vpop.f32.mrb[0].mxu0
          %v1682 = vadd.f32 %v1538, %v1681
          %v1683 = vpop.f32.mrb[0].mxu0
          %1684 = vmatprep.mubr.bf16.mxu0 %v1499
          %1685 = vmatmul.mubr.bf16.gmra.mrb[0].mxu0 %v1455
          %v1686 = vpop.f32.mrb[0].mxu0
          %v1687 = vadd.f32 %v1538, %v1686
          %v1688 = vpop.f32.mrb[0].mxu0
          %v1689 = vpop.f32.mrb[0].mxu0
          %v1690 = vadd.f32 %v1538, %v1689
          %v1691 = vpop.f32.mrb[0].mxu0
          %1692 = vmatprep.mubr.bf16.mxu0 %v1500
          %1693 = vmatmul.mubr.bf16.gmra.mrb[0].mxu0 %v1456
          %v1694 = vpop.f32.mrb[0].mxu0
          %v1695 = vadd.f32 %v1538, %v1694
          %v1696 = vpop.f32.mrb[0].mxu0
          %v1697 = vpop.f32.mrb[0].mxu0
          %v1698 = vadd.f32 %v1538, %v1697
          %v1699 = vpop.f32.mrb[0].mxu0
          %1700 = vdwg.mxu0
          %1701 = vst [vmem:[#allocation15] sm:$0xff] %v1671
          %1702 = vst [vmem:[#allocation15 + $0x8] sm:$0xff] %v1674
          %1703 = vst [vmem:[#allocation15 + $0x10] sm:$0xff] %v1679
          %1704 = vst [vmem:[#allocation15 + $0x18] sm:$0xff] %v1682
          %1705 = vst [vmem:[#allocation15 + $0x20] sm:$0xff] %v1687
          %1706 = vst [vmem:[#allocation15 + $0x28] sm:$0xff] %v1690
          %1707 = vst [vmem:[#allocation15 + $0x30] sm:$0xff] %v1695
          %1708 = vst [vmem:[#allocation15 + $0x38] sm:$0xff] %v1698
        $region92: #{tpu_custom_call.1} parent=55 // pred_fallthru
          _
        // Predicated region
        $region93: #{tpu_custom_call.1} parent=55 // pred_check
          %p1709 = pneg %p259
        $region94: #{tpu_custom_call.1} parent=55 // pred_check_branch
          %1711 = sbr.rel (%p1709) target = $region96
        $region95: #{tpu_custom_call.1} parent=55 // pred_region
          %s1713 = ssub.s32 1024, 1024
          %1714 = vsyncadd [#allocation6], %s1713
          %s1715 = sshll.u32 [#allocation15], 4
          %s1716 = int_to_ptr.vmem [resolvable:$true] %s1715
          %1721 = dma.vmem_to_hbm [thread:$0]  %s1716, 1024, %s9, [#allocation6], 128, 128, 8
        $region96: #{tpu_custom_call.1} parent=55 // pred_fallthru
          _
        // Predicated region
        $region97: #{tpu_custom_call.1} parent=55 // pred_check
          %p1722 = pneg %p259
        $region98: #{tpu_custom_call.1} parent=55 // pred_check_branch
          %1724 = sbr.rel (%p1722) target = $region100
        $region99: #{tpu_custom_call.1} parent=55 // pred_region
          %1725 = dma.done [#allocation6], 1024
        $region100: #{tpu_custom_call.1} parent=55 // pred_fallthru
          _
      $region56: #{tpu_custom_call.1} parent=5 // pred_fallthru
        _
      %p1726 = scmp.le.s32.totalorder 2, %s22
      // Predicated region
      $region101: #{tpu_custom_call.1} parent=5 // pred_check
        %p1727 = pneg %p1726
      $region102: #{tpu_custom_call.1} parent=5 // pred_check_branch
        %1729 = sbr.rel (%p1727) target = $region104
      $region103: #{tpu_custom_call.1} parent=5 // pred_region
        %s1730 = ssub.s32 %s22, 2
      $region104: #{tpu_custom_call.1} parent=5 // pred_fallthru
        _
    $region6: #{tpu_custom_call.1} parent=1 // loop_footer
      %s26 = sadd.s32 1, %s22
    $region7: #{tpu_custom_call.1} parent=1 // loop_footer_branch
      %21 = sbr.rel target = $region3
    $region8: #{tpu_custom_call.1} parent=1 // loop_exit
      _
    %1731 = vsyncpa [#allocation5], 1
    %s1732 = scalar_lea.sflag [#allocation5], 1
    %1733 = vsyncpa %s1732, 1
    %1734 = vsyncpa [#allocation8], 1
    %1735 = vsyncpa [#allocation11], 1
    %s1736 = scalar_lea.sflag [#allocation11], 1
    %1737 = vsyncpa %s1736, 1
    %1738 = vsyncpa [#allocation14], 1
    %1739 = vsyncpa [#allocation6], 1
    %s1740 = scalar_lea.sflag [#allocation6], 1
    %1741 = vsyncpa %s1740, 1

</llo_original>
